<compile_context>
chip_gen: v6e
topology: v6e:2x2x1
jax: 0.10.0
libtpu: 0.0.40
codegen_flags: <defaults>
</compile_context>

<pallas_src>
import jax
import jax.numpy as jnp
from jax.experimental import pallas as pl
from jax.experimental.pallas import tpu as pltpu

INPUT_DIM = 2
HIDDEN_DIM = 512
OUTPUT_DIM = 28 * 28            # 784

IN_PAD = 128                    # lane-aligned padded input width
OUT_PAD = 896                   # 7 * 128, lane-aligned padded output width


def _round_up(x, m):
    return ((x + m - 1) // m) * m


def decoder_kernel(x_ref, w1_ref, b1_ref, w2_ref, b2_ref, w3_ref, b3_ref, o_ref):
    """Fused 3-layer MLP + sigmoid for one batch tile.

    x_ref: (bm, IN_PAD) bf16; w*_ref: bf16 (in, out) layout; b*_ref: f32 rows.
    All matmuls accumulate in f32 on the MXU.
    """
    x = x_ref[...]                                                    # (bm, 128) bf16
    h = jnp.dot(x, w1_ref[...], preferred_element_type=jnp.float32) + b1_ref[...]
    h = jnp.maximum(h, 0.0).astype(jnp.bfloat16)                      # ReLU -> bf16
    h = jnp.dot(h, w2_ref[...], preferred_element_type=jnp.float32) + b2_ref[...]
    h = jnp.maximum(h, 0.0).astype(jnp.bfloat16)                      # ReLU -> bf16
    z = jnp.dot(h, w3_ref[...], preferred_element_type=jnp.float32) + b3_ref[...]
    o_ref[...] = (1.0 / (1.0 + jnp.exp(-z))).astype(o_ref.dtype)      # Sigmoid


def decoder_forward(noise, params, *, bm=256):
    """noise: (..., 2) latent codes (any leading shape, flattened to (B, 2))."""
    w1, b1, w2, b2, w3, b3 = params
    x2d = noise.reshape(-1, INPUT_DIM)
    B = x2d.shape[0]

    # Small batches: one grid step; large batches: big MXU-friendly tiles.
    bm = max(8, min(bm, _round_up(B, 8)))
    Bp = _round_up(B, bm)

    # Host-side padding: ragged batch -> multiple of bm, 2 input lanes -> 128.
    x_pad = jnp.zeros((Bp, IN_PAD), jnp.bfloat16)
    x_pad = x_pad.at[:B, :INPUT_DIM].set(x2d.astype(jnp.bfloat16))

    # Weights in bf16, (in, out) layout; W1 rows padded 2->128, W3/b3 cols 784->896.
    w1_p = jnp.zeros((IN_PAD, HIDDEN_DIM), jnp.bfloat16).at[:INPUT_DIM, :].set(
        w1.astype(jnp.bfloat16))
    w2_p = w2.astype(jnp.bfloat16)
    w3_p = jnp.zeros((HIDDEN_DIM, OUT_PAD), jnp.bfloat16).at[:, :OUTPUT_DIM].set(
        w3.astype(jnp.bfloat16))
    b1_p = b1.reshape(1, HIDDEN_DIM).astype(jnp.float32)
    b2_p = b2.reshape(1, HIDDEN_DIM).astype(jnp.float32)
    b3_p = jnp.zeros((1, OUT_PAD), jnp.float32).at[:, :OUTPUT_DIM].set(
        b3.reshape(1, OUTPUT_DIM).astype(jnp.float32))

    grid = (Bp // bm,)
    full = lambda i: (0, 0)     # weights/biases: same (only) block every grid step

    out_padded = pl.pallas_call(
        decoder_kernel,
        out_shape=jax.ShapeDtypeStruct((Bp, OUT_PAD), jnp.float32),
        grid_spec=pltpu.PrefetchScalarGridSpec(
            num_scalar_prefetch=0,
            grid=grid,
            in_specs=[
                pl.BlockSpec((bm, IN_PAD), lambda i: (i, 0)),        # x tile
                pl.BlockSpec((IN_PAD, HIDDEN_DIM), full),            # W1 (padded)
                pl.BlockSpec((1, HIDDEN_DIM), full),                 # b1
                pl.BlockSpec((HIDDEN_DIM, HIDDEN_DIM), full),        # W2
                pl.BlockSpec((1, HIDDEN_DIM), full),                 # b2
                pl.BlockSpec((HIDDEN_DIM, OUT_PAD), full),           # W3 (padded)
                pl.BlockSpec((1, OUT_PAD), full),                    # b3 (padded)
            ],
            out_specs=pl.BlockSpec((bm, OUT_PAD), lambda i: (i, 0)),
        ),
        compiler_params=pltpu.CompilerParams(
            dimension_semantics=("parallel",),
        ),
    )(x_pad, w1_p, b1_p, w2_p, b2_p, w3_p, b3_p)

    # Strip batch + lane padding back to the logical (B, 784) output.
    return out_padded[:B, :OUTPUT_DIM]


def init_params(key):
    """Mirrors the PyTorch init: weights ~ Normal(0, 0.01), biases = 0.
    Weights are generated directly in (in, out) layout (equivalent in
    distribution to sampling (out, in) and transposing)."""
    k1, k2, k3 = jax.random.split(key, 3)
    std = 0.01
    w1 = std * jax.random.normal(k1, (INPUT_DIM, HIDDEN_DIM), jnp.float32)
    b1 = jnp.zeros((HIDDEN_DIM,), jnp.float32)
    w2 = std * jax.random.normal(k2, (HIDDEN_DIM, HIDDEN_DIM), jnp.float32)
    b2 = jnp.zeros((HIDDEN_DIM,), jnp.float32)
    w3 = std * jax.random.normal(k3, (HIDDEN_DIM, OUTPUT_DIM), jnp.float32)
    b3 = jnp.zeros((OUTPUT_DIM,), jnp.float32)
    return (w1, b1, w2, b2, w3, b3)


def reference_forward(noise, params):
    """Plain f32 JAX reference of the same forward pass (correctness check)."""
    w1, b1, w2, b2, w3, b3 = params
    h = noise.reshape(-1, INPUT_DIM)
    h = jnp.maximum(h @ w1 + b1, 0.0)
    h = jnp.maximum(h @ w2 + b2, 0.0)
    return jax.nn.sigmoid(h @ w3 + b3)


if __name__ == "__main__":
    key = jax.random.PRNGKey(0)
    k_params, k_x = jax.random.split(key)

    params = init_params(k_params)

    # Small latent batch: (B, 2) noise codes, like the VAE/GAN decoder input.
    B = 16
    noise = jax.random.normal(k_x, (B, INPUT_DIM), jnp.float32)

    out = decoder_forward(noise, params, bm=256)
    out = jax.block_until_ready(out)

    ref = reference_forward(noise, params)
    assert out.shape == (B, OUTPUT_DIM)
    # bf16 matmul inputs with f32 accumulation -> slightly looser tolerance.
    assert jnp.allclose(out, ref, atol=2e-3, rtol=2e-3)

    print("KERNEL_OK")
</pallas_src>

<mosaic_0001>
module attributes {stable_mosaic.version = 11 : i64} {
  func.func @decoder_kernel(%arg0: i32, %arg1: memref<16x128xbf16, #tpu.memory_space<vmem>>, %arg2: memref<128x512xbf16, #tpu.memory_space<vmem>>, %arg3: memref<1x512xf32, #tpu.memory_space<vmem>>, %arg4: memref<512x512xbf16, #tpu.memory_space<vmem>>, %arg5: memref<1x512xf32, #tpu.memory_space<vmem>>, %arg6: memref<512x896xbf16, #tpu.memory_space<vmem>>, %arg7: memref<1x896xf32, #tpu.memory_space<vmem>>, %arg8: memref<16x896xf32, #tpu.memory_space<vmem>>) attributes {dimension_semantics = [#tpu.dimension_semantics<parallel>], iteration_bounds = array<i64: 1>, scalar_prefetch = 0 : i64, scratch_operands = 0 : i64, tpu.core_type = #tpu.core_type<tc>, window_params = [{transform_indices = @transform_0, window_bounds = array<i64: 16, 128>}, {pipeline_mode = #tpu.pipeline_mode<synchronous>, transform_indices = @transform_1, window_bounds = array<i64: 128, 512>}, {pipeline_mode = #tpu.pipeline_mode<synchronous>, transform_indices = @transform_2, window_bounds = array<i64: 1, 512>}, {pipeline_mode = #tpu.pipeline_mode<synchronous>, transform_indices = @transform_3, window_bounds = array<i64: 512, 512>}, {pipeline_mode = #tpu.pipeline_mode<synchronous>, transform_indices = @transform_4, window_bounds = array<i64: 1, 512>}, {pipeline_mode = #tpu.pipeline_mode<synchronous>, transform_indices = @transform_5, window_bounds = array<i64: 512, 896>}, {pipeline_mode = #tpu.pipeline_mode<synchronous>, transform_indices = @transform_6, window_bounds = array<i64: 1, 896>}, {transform_indices = @transform_7, window_bounds = array<i64: 16, 896>}]} {
    %c0 = arith.constant 0 : index
    %c0_0 = arith.constant 0 : index
    %0 = vector.load %arg1[%c0, %c0_0] : memref<16x128xbf16, #tpu.memory_space<vmem>>, vector<16x128xbf16>
    %c0_1 = arith.constant 0 : index
    %c0_2 = arith.constant 0 : index
    %1 = vector.load %arg2[%c0_1, %c0_2] : memref<128x512xbf16, #tpu.memory_space<vmem>>, vector<128x512xbf16>
    %cst = arith.constant dense<0.000000e+00> : vector<16x512xf32>
    %2 = tpu.matmul %0, %1, %cst {dimension_numbers = #tpu.dot_dimension_numbers<[1], [0], [0], [1], [0, 0, 1, 1], [], []>} : vector<16x128xbf16>, vector<128x512xbf16>, vector<16x512xf32> -> vector<16x512xf32>
    %c0_3 = arith.constant 0 : index
    %c0_4 = arith.constant 0 : index
    %3 = vector.load %arg3[%c0_3, %c0_4] : memref<1x512xf32, #tpu.memory_space<vmem>>, vector<1x512xf32>
    %4 = vector.broadcast %3 : vector<1x512xf32> to vector<16x512xf32>
    %5 = arith.addf %2, %4 : vector<16x512xf32>
    %cst_5 = arith.constant 0.000000e+00 : f32
    %6 = vector.broadcast %cst_5 : f32 to vector<16x512xf32>
    %7 = arith.maximumf %5, %6 : vector<16x512xf32>
    %8 = arith.truncf %7 : vector<16x512xf32> to vector<16x512xbf16>
    %c0_6 = arith.constant 0 : index
    %c0_7 = arith.constant 0 : index
    %9 = vector.load %arg4[%c0_6, %c0_7] : memref<512x512xbf16, #tpu.memory_space<vmem>>, vector<512x512xbf16>
    %cst_8 = arith.constant dense<0.000000e+00> : vector<16x512xf32>
    %10 = tpu.matmul %8, %9, %cst_8 {dimension_numbers = #tpu.dot_dimension_numbers<[1], [0], [0], [1], [0, 0, 1, 1], [], []>} : vector<16x512xbf16>, vector<512x512xbf16>, vector<16x512xf32> -> vector<16x512xf32>
    %c0_9 = arith.constant 0 : index
    %c0_10 = arith.constant 0 : index
    %11 = vector.load %arg5[%c0_9, %c0_10] : memref<1x512xf32, #tpu.memory_space<vmem>>, vector<1x512xf32>
    %12 = vector.broadcast %11 : vector<1x512xf32> to vector<16x512xf32>
    %13 = arith.addf %10, %12 : vector<16x512xf32>
    %cst_11 = arith.constant 0.000000e+00 : f32
    %14 = vector.broadcast %cst_11 : f32 to vector<16x512xf32>
    %15 = arith.maximumf %13, %14 : vector<16x512xf32>
    %16 = arith.truncf %15 : vector<16x512xf32> to vector<16x512xbf16>
    %c0_12 = arith.constant 0 : index
    %c0_13 = arith.constant 0 : index
    %17 = vector.load %arg6[%c0_12, %c0_13] : memref<512x896xbf16, #tpu.memory_space<vmem>>, vector<512x896xbf16>
    %cst_14 = arith.constant dense<0.000000e+00> : vector<16x896xf32>
    %18 = tpu.matmul %16, %17, %cst_14 {dimension_numbers = #tpu.dot_dimension_numbers<[1], [0], [0], [1], [0, 0, 1, 1], [], []>} : vector<16x512xbf16>, vector<512x896xbf16>, vector<16x896xf32> -> vector<16x896xf32>
    %c0_15 = arith.constant 0 : index
    %c0_16 = arith.constant 0 : index
    %19 = vector.load %arg7[%c0_15, %c0_16] : memref<1x896xf32, #tpu.memory_space<vmem>>, vector<1x896xf32>
    %20 = vector.broadcast %19 : vector<1x896xf32> to vector<16x896xf32>
    %21 = arith.addf %18, %20 : vector<16x896xf32>
    %cst_17 = arith.constant 0.000000e+00 : f32
    %22 = vector.broadcast %cst_17 : f32 to vector<16x896xf32>
    %23 = arith.subf %22, %21 : vector<16x896xf32>
    %24 = math.exp %23 : vector<16x896xf32>
    %cst_18 = arith.constant 1.000000e+00 : f32
    %25 = vector.broadcast %cst_18 : f32 to vector<16x896xf32>
    %26 = arith.addf %25, %24 : vector<16x896xf32>
    %cst_19 = arith.constant 1.000000e+00 : f32
    %27 = vector.broadcast %cst_19 : f32 to vector<16x896xf32>
    %28 = arith.divf %27, %26 : vector<16x896xf32>
    %c0_20 = arith.constant 0 : index
    %c0_21 = arith.constant 0 : index
    %29 = vector.load %arg8[%c0_20, %c0_21] : memref<16x896xf32, #tpu.memory_space<vmem>>, vector<16x896xf32>
    tpu.vector_store %arg8[%c0_20, %c0_21], %28 {strides = array<i32>} : memref<16x896xf32, #tpu.memory_space<vmem>>, vector<16x896xf32>,
    return
  }
  func.func @transform_0(%arg0: i32) -> (i32, i32) {
    %c0_i32 = arith.constant 0 : i32
    %c0_i32_0 = arith.constant 0 : i32
    return %arg0, %c0_i32 : i32, i32
  }
  func.func @transform_1(%arg0: i32) -> (i32, i32) {
    %c0_i32 = arith.constant 0 : i32
    %c0_i32_0 = arith.constant 0 : i32
    %c0_i32_1 = arith.constant 0 : i32
    return %c0_i32, %c0_i32_0 : i32, i32
  }
  func.func @transform_2(%arg0: i32) -> (i32, i32) {
    %c0_i32 = arith.constant 0 : i32
    %c0_i32_0 = arith.constant 0 : i32
    %c0_i32_1 = arith.constant 0 : i32
    return %c0_i32, %c0_i32_0 : i32, i32
  }
  func.func @transform_3(%arg0: i32) -> (i32, i32) {
    %c0_i32 = arith.constant 0 : i32
    %c0_i32_0 = arith.constant 0 : i32
    %c0_i32_1 = arith.constant 0 : i32
    return %c0_i32, %c0_i32_0 : i32, i32
  }
  func.func @transform_4(%arg0: i32) -> (i32, i32) {
    %c0_i32 = arith.constant 0 : i32
    %c0_i32_0 = arith.constant 0 : i32
    %c0_i32_1 = arith.constant 0 : i32
    return %c0_i32, %c0_i32_0 : i32, i32
  }
  func.func @transform_5(%arg0: i32) -> (i32, i32) {
    %c0_i32 = arith.constant 0 : i32
    %c0_i32_0 = arith.constant 0 : i32
    %c0_i32_1 = arith.constant 0 : i32
    return %c0_i32, %c0_i32_0 : i32, i32
  }
  func.func @transform_6(%arg0: i32) -> (i32, i32) {
    %c0_i32 = arith.constant 0 : i32
    %c0_i32_0 = arith.constant 0 : i32
    %c0_i32_1 = arith.constant 0 : i32
    return %c0_i32, %c0_i32_0 : i32, i32
  }
  func.func @transform_7(%arg0: i32) -> (i32, i32) {
    %c0_i32 = arith.constant 0 : i32
    %c0_i32_0 = arith.constant 0 : i32
    return %arg0, %c0_i32 : i32, i32
  }
}

</mosaic_0001>

<llo_original>
// kernel: tpu_custom_call.1
$region0: #{tpu_custom_call.1}
  #allocation0 [shape = 'u32[]', space=smem, size = 0x4, offset = 0x4, fixed_abs, tag = 'smem constant byte address 0x4 - core index']
  #allocation1 [shape = 'u32[144,128]{1,0:T(1,128)}', space=vmem, size = 0x12000, scoped, tag = 'internal scratch']
  %s0 = inlined_call_operand.hbm [shape: bf16[16,128], index: 0, kind: input, shape index: {}]
  %s1 = inlined_call_operand.hbm [shape: bf16[128,512], index: 1, kind: input, shape index: {}]
  %s2 = inlined_call_operand.hbm [shape: f32[1,512], index: 2, kind: input, shape index: {}]
  %s3 = inlined_call_operand.hbm [shape: bf16[512,512], index: 3, kind: input, shape index: {}]
  %s4 = inlined_call_operand.hbm [shape: f32[1,512], index: 4, kind: input, shape index: {}]
  %s5 = inlined_call_operand.hbm [shape: bf16[512,896], index: 5, kind: input, shape index: {}]
  %s6 = inlined_call_operand.vmem [shape: f32[1,896], index: 6, kind: input, shape index: {}]
  %s7 = inlined_call_operand.hbm [shape: f32[16,896], index: 7, kind: output, shape index: {}]
  %s8 = sld [smem:[#allocation0]]
  $region62: #{tpu_custom_call.1} parent=0
    _
  %s10 = ssub.s32 1, %s8
  %s11 = scalar_select 0, %s10, %s8
  $region1: #{tpu_custom_call.1} parent=0
    #allocation2 [shape = 'u8[4096]{0}', space=vmem, size = 0x1000, scoped, tag = 'input window, operand 0, single buffered']
    #allocation3 [shape = 's32[1]{0}', space=sflag, size = 0x4, scoped, tag = 'scoped memory for tpu_custom_call.1']
    #allocation4 [shape = 's32[1]{0}', space=sflag, size = 0x4, scoped, tag = 'scoped memory for tpu_custom_call.1']
    #allocation5 [shape = 'u8[131072]{0}', space=vmem, size = 0x20000, scoped, tag = 'input window, operand 1, single buffered']
    #allocation6 [shape = 's32[1]{0}', space=sflag, size = 0x4, scoped, tag = 'scoped memory for tpu_custom_call.1']
    #allocation7 [shape = 'u8[2048]{0}', space=vmem, size = 0x800, scoped, tag = 'input window, operand 2, single buffered']
    #allocation8 [shape = 'u8[524288]{0}', space=vmem, size = 0x80000, scoped, tag = 'input window, operand 3, single buffered']
    #allocation9 [shape = 's32[1]{0}', space=sflag, size = 0x4, scoped, tag = 'scoped memory for tpu_custom_call.1']
    #allocation10 [shape = 'u8[2048]{0}', space=vmem, size = 0x800, scoped, tag = 'input window, operand 4, single buffered']
    #allocation11 [shape = 'u8[917504]{0}', space=vmem, size = 0xe0000, scoped, tag = 'input window, operand 5, single buffered']
    #allocation12 [shape = 's32[1]{0}', space=sflag, size = 0x4, scoped, tag = 'scoped memory for tpu_custom_call.1']
    #allocation13 [shape = 'u8[57344]{0}', space=vmem, size = 0xe000, scoped, tag = 'output window, operand 0, single buffered']
    %12 = vsyncpa [#allocation3], 0
    %13 = vsyncpa [#allocation6], 0
    %14 = vsyncpa [#allocation9], 0
    %15 = vsyncpa [#allocation12], 0
    %16 = vsyncpa [#allocation4], 0
    // Predicated region
    $region2: #{tpu_custom_call.1} parent=1 // pred_check
      _
    $region3: #{tpu_custom_call.1} parent=1 // pred_check_branch
      %18 = sbr.rel (0) target = $region5
    $region4: #{tpu_custom_call.1} parent=1 // pred_region
      %s20 = ssub.s32 128, 128
      %21 = vsyncadd [#allocation3], %s20
      %s22 = sshll.u32 [#allocation2], 4
      %s23 = int_to_ptr.vmem [resolvable:$true] %s22
      %28 = dma.hbm_to_vmem [thread:$0]  %s0, 128, %s23, [#allocation3], 64, 64, 4
    $region5: #{tpu_custom_call.1} parent=1 // pred_fallthru
      _
    // Predicated region
    $region6: #{tpu_custom_call.1} parent=1 // pred_check
      _
    $region7: #{tpu_custom_call.1} parent=1 // pred_check_branch
      %30 = sbr.rel (0) target = $region9
    $region8: #{tpu_custom_call.1} parent=1 // pred_region
      %s32 = ssub.s32 4096, 4096
      %33 = vsyncadd [#allocation6], %s32
      %s34 = sshll.u32 [#allocation5], 4
      %s35 = int_to_ptr.vmem [resolvable:$true] %s34
      %40 = dma.hbm_to_vmem [thread:$0]  %s1, 4096, %s35, [#allocation6], 256, 256, 16
    $region9: #{tpu_custom_call.1} parent=1 // pred_fallthru
      _
    // Predicated region
    $region10: #{tpu_custom_call.1} parent=1 // pred_check
      _
    $region11: #{tpu_custom_call.1} parent=1 // pred_check_branch
      %42 = sbr.rel (0) target = $region13
    $region12: #{tpu_custom_call.1} parent=1 // pred_region
      %s44 = ssub.s32 64, 64
      %45 = vsyncadd [#allocation6], %s44
      %s47 = sshll.u32 [#allocation7], 4
      %s48 = int_to_ptr.vmem [resolvable:$true] %s47
      %50 = dma.hbm_to_vmem [thread:$0]  %s2, 64, %s48, [#allocation6]
    $region13: #{tpu_custom_call.1} parent=1 // pred_fallthru
      _
    // Predicated region
    $region14: #{tpu_custom_call.1} parent=1 // pred_check
      _
    $region15: #{tpu_custom_call.1} parent=1 // pred_check_branch
      %52 = sbr.rel (0) target = $region17
    $region16: #{tpu_custom_call.1} parent=1 // pred_region
      %s54 = ssub.s32 16384, 16384
      %55 = vsyncadd [#allocation9], %s54
      %s56 = sshll.u32 [#allocation8], 4
      %s57 = int_to_ptr.vmem [resolvable:$true] %s56
      %62 = dma.hbm_to_vmem [thread:$0]  %s3, 16384, %s57, [#allocation9], 256, 256, 16
    $region17: #{tpu_custom_call.1} parent=1 // pred_fallthru
      _
    // Predicated region
    $region18: #{tpu_custom_call.1} parent=1 // pred_check
      _
    $region19: #{tpu_custom_call.1} parent=1 // pred_check_branch
      %64 = sbr.rel (0) target = $region21
    $region20: #{tpu_custom_call.1} parent=1 // pred_region
      %s66 = ssub.s32 64, 64
      %67 = vsyncadd [#allocation9], %s66
      %s69 = sshll.u32 [#allocation10], 4
      %s70 = int_to_ptr.vmem [resolvable:$true] %s69
      %72 = dma.hbm_to_vmem [thread:$0]  %s4, 64, %s70, [#allocation9]
    $region21: #{tpu_custom_call.1} parent=1 // pred_fallthru
      _
    // Predicated region
    $region22: #{tpu_custom_call.1} parent=1 // pred_check
      _
    $region23: #{tpu_custom_call.1} parent=1 // pred_check_branch
      %74 = sbr.rel (0) target = $region25
    $region24: #{tpu_custom_call.1} parent=1 // pred_region
      %s76 = ssub.s32 28672, 28672
      %77 = vsyncadd [#allocation12], %s76
      %s78 = sshll.u32 [#allocation11], 4
      %s79 = int_to_ptr.vmem [resolvable:$true] %s78
      %84 = dma.hbm_to_vmem [thread:$0]  %s5, 28672, %s79, [#allocation12], 448, 448, 28
    $region25: #{tpu_custom_call.1} parent=1 // pred_fallthru
      _
    // Predicated region
    $region26: #{tpu_custom_call.1} parent=1 // pred_check
      _
    $region27: #{tpu_custom_call.1} parent=1 // pred_check_branch
      %86 = sbr.rel (0) target = $region29
    $region28: #{tpu_custom_call.1} parent=1 // pred_region
      _
    $region29: #{tpu_custom_call.1} parent=1 // pred_fallthru
      _
    // Predicated region
    $region30: #{tpu_custom_call.1} parent=1 // pred_check
      _
    $region31: #{tpu_custom_call.1} parent=1 // pred_check_branch
      %88 = sbr.rel (0) target = $region33
    $region32: #{tpu_custom_call.1} parent=1 // pred_region
      %89 = dma.done [#allocation3], 128
    $region33: #{tpu_custom_call.1} parent=1 // pred_fallthru
      _
    // Predicated region
    $region34: #{tpu_custom_call.1} parent=1 // pred_check
      _
    $region35: #{tpu_custom_call.1} parent=1 // pred_check_branch
      %91 = sbr.rel (0) target = $region37
    $region36: #{tpu_custom_call.1} parent=1 // pred_region
      %92 = dma.done [#allocation6], 4096
    $region37: #{tpu_custom_call.1} parent=1 // pred_fallthru
      _
    // Predicated region
    $region38: #{tpu_custom_call.1} parent=1 // pred_check
      _
    $region39: #{tpu_custom_call.1} parent=1 // pred_check_branch
      %94 = sbr.rel (0) target = $region41
    $region40: #{tpu_custom_call.1} parent=1 // pred_region
      %95 = dma.done [#allocation6], 64
    $region41: #{tpu_custom_call.1} parent=1 // pred_fallthru
      _
    // Predicated region
    $region42: #{tpu_custom_call.1} parent=1 // pred_check
      _
    $region43: #{tpu_custom_call.1} parent=1 // pred_check_branch
      %97 = sbr.rel (0) target = $region45
    $region44: #{tpu_custom_call.1} parent=1 // pred_region
      %98 = dma.done [#allocation9], 16384
    $region45: #{tpu_custom_call.1} parent=1 // pred_fallthru
      _
    // Predicated region
    $region46: #{tpu_custom_call.1} parent=1 // pred_check
      _
    $region47: #{tpu_custom_call.1} parent=1 // pred_check_branch
      %100 = sbr.rel (0) target = $region49
    $region48: #{tpu_custom_call.1} parent=1 // pred_region
      %101 = dma.done [#allocation9], 64
    $region49: #{tpu_custom_call.1} parent=1 // pred_fallthru
      _
    // Predicated region
    $region50: #{tpu_custom_call.1} parent=1 // pred_check
      _
    $region51: #{tpu_custom_call.1} parent=1 // pred_check_branch
      %103 = sbr.rel (0) target = $region53
    $region52: #{tpu_custom_call.1} parent=1 // pred_region
      %104 = dma.done [#allocation12], 28672
    $region53: #{tpu_custom_call.1} parent=1 // pred_fallthru
      _
    %v106 = vld [vmem:[#allocation2] sm:$0xf]
    %v107 = vld [vmem:[#allocation2 + $0x4] sm:$0xf]
    %v108 = vld [vmem:[#allocation5] sm:$0xff]
    %v109 = vld [vmem:[#allocation5 + $0x8] sm:$0xff]
    %v110 = vld [vmem:[#allocation5 + $0x10] sm:$0xff]
    %v111 = vld [vmem:[#allocation5 + $0x18] sm:$0xff]
    %v112 = vld [vmem:[#allocation5 + $0x20] sm:$0xff]
    %v113 = vld [vmem:[#allocation5 + $0x28] sm:$0xff]
    %v114 = vld [vmem:[#allocation5 + $0x30] sm:$0xff]
    %v115 = vld [vmem:[#allocation5 + $0x38] sm:$0xff]
    %v116 = vld [vmem:[#allocation5 + $0x40] sm:$0xff]
    %v117 = vld [vmem:[#allocation5 + $0x48] sm:$0xff]
    %v118 = vld [vmem:[#allocation5 + $0x50] sm:$0xff]
    %v119 = vld [vmem:[#allocation5 + $0x58] sm:$0xff]
    %v120 = vld [vmem:[#allocation5 + $0x60] sm:$0xff]
    %v121 = vld [vmem:[#allocation5 + $0x68] sm:$0xff]
    %v122 = vld [vmem:[#allocation5 + $0x70] sm:$0xff]
    %v123 = vld [vmem:[#allocation5 + $0x78] sm:$0xff]
    %v124 = vld [vmem:[#allocation5 + $0x80] sm:$0xff]
    %v125 = vld [vmem:[#allocation5 + $0x88] sm:$0xff]
    %v126 = vld [vmem:[#allocation5 + $0x90] sm:$0xff]
    %v127 = vld [vmem:[#allocation5 + $0x98] sm:$0xff]
    %v128 = vld [vmem:[#allocation5 + $0xa0] sm:$0xff]
    %v129 = vld [vmem:[#allocation5 + $0xa8] sm:$0xff]
    %v130 = vld [vmem:[#allocation5 + $0xb0] sm:$0xff]
    %v131 = vld [vmem:[#allocation5 + $0xb8] sm:$0xff]
    %v132 = vld [vmem:[#allocation5 + $0xc0] sm:$0xff]
    %v133 = vld [vmem:[#allocation5 + $0xc8] sm:$0xff]
    %v134 = vld [vmem:[#allocation5 + $0xd0] sm:$0xff]
    %v135 = vld [vmem:[#allocation5 + $0xd8] sm:$0xff]
    %v136 = vld [vmem:[#allocation5 + $0xe0] sm:$0xff]
    %v137 = vld [vmem:[#allocation5 + $0xe8] sm:$0xff]
    %v138 = vld [vmem:[#allocation5 + $0xf0] sm:$0xff]
    %v139 = vld [vmem:[#allocation5 + $0xf8] sm:$0xff]
    %v140 = vld [vmem:[#allocation7] sm:$0xf]
    %v142 = vlaneseq
    %v143 = vshrl.u32 %v142, 7
    %v144 = vsub.s32 0, %v143
    %v145 = vrot.slane %v140, %v144
    %v146 = vlaneseq
    %v147 = vshrl.u32 %v146, 7
    %v148 = vsub.s32 1, %v147
    %v149 = vrot.slane %v140, %v148
    %v150 = vlaneseq
    %v151 = vshrl.u32 %v150, 7
    %v152 = vsub.s32 2, %v151
    %v153 = vrot.slane %v140, %v152
    %v154 = vlaneseq
    %v155 = vshrl.u32 %v154, 7
    %v156 = vsub.s32 3, %v155
    %v157 = vrot.slane %v140, %v156
    %v164 = vunpack.c.l.b16 %v106
    %v165 = vunpack.c.l.b16 %v107
    %v166 = vpack.c.b16 %v165, %v164
    %v200 = vunpack.c.l.b16 %v108
    %v201 = vunpack.c.h.b16 %v108
    %v202 = vunpack.c.l.b16 %v109
    %v203 = vunpack.c.h.b16 %v109
    %v204 = vunpack.c.l.b16 %v110
    %v205 = vunpack.c.h.b16 %v110
    %v206 = vunpack.c.l.b16 %v111
    %v207 = vunpack.c.h.b16 %v111
    %v208 = vunpack.c.l.b16 %v112
    %v209 = vunpack.c.h.b16 %v112
    %v210 = vunpack.c.l.b16 %v113
    %v211 = vunpack.c.h.b16 %v113
    %v212 = vunpack.c.l.b16 %v114
    %v213 = vunpack.c.h.b16 %v114
    %v214 = vunpack.c.l.b16 %v115
    %v215 = vunpack.c.h.b16 %v115
    %v216 = vunpack.c.l.b16 %v116
    %v217 = vunpack.c.h.b16 %v116
    %v218 = vunpack.c.l.b16 %v117
    %v219 = vunpack.c.h.b16 %v117
    %v220 = vunpack.c.l.b16 %v118
    %v221 = vunpack.c.h.b16 %v118
    %v222 = vunpack.c.l.b16 %v119
    %v223 = vunpack.c.h.b16 %v119
    %v224 = vunpack.c.l.b16 %v120
    %v225 = vunpack.c.h.b16 %v120
    %v226 = vunpack.c.l.b16 %v121
    %v227 = vunpack.c.h.b16 %v121
    %v228 = vunpack.c.l.b16 %v122
    %v229 = vunpack.c.h.b16 %v122
    %v230 = vunpack.c.l.b16 %v123
    %v231 = vunpack.c.h.b16 %v123
    %v232 = vunpack.c.l.b16 %v124
    %v233 = vunpack.c.h.b16 %v124
    %v234 = vunpack.c.l.b16 %v125
    %v235 = vunpack.c.h.b16 %v125
    %v236 = vunpack.c.l.b16 %v126
    %v237 = vunpack.c.h.b16 %v126
    %v238 = vunpack.c.l.b16 %v127
    %v239 = vunpack.c.h.b16 %v127
    %v240 = vunpack.c.l.b16 %v128
    %v241 = vunpack.c.h.b16 %v128
    %v242 = vunpack.c.l.b16 %v129
    %v243 = vunpack.c.h.b16 %v129
    %v244 = vunpack.c.l.b16 %v130
    %v245 = vunpack.c.h.b16 %v130
    %v246 = vunpack.c.l.b16 %v131
    %v247 = vunpack.c.h.b16 %v131
    %v248 = vunpack.c.l.b16 %v132
    %v249 = vunpack.c.h.b16 %v132
    %v250 = vunpack.c.l.b16 %v133
    %v251 = vunpack.c.h.b16 %v133
    %v252 = vunpack.c.l.b16 %v134
    %v253 = vunpack.c.h.b16 %v134
    %v254 = vunpack.c.l.b16 %v135
    %v255 = vunpack.c.h.b16 %v135
    %v256 = vunpack.c.l.b16 %v136
    %v257 = vunpack.c.h.b16 %v136
    %v258 = vunpack.c.l.b16 %v137
    %v259 = vunpack.c.h.b16 %v137
    %v260 = vunpack.c.l.b16 %v138
    %v261 = vunpack.c.h.b16 %v138
    %v262 = vunpack.c.l.b16 %v139
    %v263 = vunpack.c.h.b16 %v139
    %v264 = vpack.c.b16 %v204, %v200
    %v265 = vpack.c.b16 %v205, %v201
    %v266 = vpack.c.b16 %v206, %v202
    %v267 = vpack.c.b16 %v207, %v203
    %v268 = vpack.c.b16 %v212, %v208
    %v269 = vpack.c.b16 %v213, %v209
    %v270 = vpack.c.b16 %v214, %v210
    %v271 = vpack.c.b16 %v215, %v211
    %v272 = vpack.c.b16 %v220, %v216
    %v273 = vpack.c.b16 %v221, %v217
    %v274 = vpack.c.b16 %v222, %v218
    %v275 = vpack.c.b16 %v223, %v219
    %v276 = vpack.c.b16 %v228, %v224
    %v277 = vpack.c.b16 %v229, %v225
    %v278 = vpack.c.b16 %v230, %v226
    %v279 = vpack.c.b16 %v231, %v227
    %v280 = vpack.c.b16 %v236, %v232
    %v281 = vpack.c.b16 %v237, %v233
    %v282 = vpack.c.b16 %v238, %v234
    %v283 = vpack.c.b16 %v239, %v235
    %v284 = vpack.c.b16 %v244, %v240
    %v285 = vpack.c.b16 %v245, %v241
    %v286 = vpack.c.b16 %v246, %v242
    %v287 = vpack.c.b16 %v247, %v243
    %v288 = vpack.c.b16 %v252, %v248
    %v289 = vpack.c.b16 %v253, %v249
    %v290 = vpack.c.b16 %v254, %v250
    %v291 = vpack.c.b16 %v255, %v251
    %v292 = vpack.c.b16 %v260, %v256
    %v293 = vpack.c.b16 %v261, %v257
    %v294 = vpack.c.b16 %v262, %v258
    %v295 = vpack.c.b16 %v263, %v259
    %328 = vmatprep.subr.bf16.mxu0 %v293
    %329 = vmatpush1.bf16.msra.mxu0 %v292
    %330 = vmatprep.subr.bf16.mxu0 %v289
    %331 = vmatpush1.bf16.msra.mxu0 %v288
    %332 = vmatprep.subr.bf16.mxu0 %v285
    %333 = vmatpush1.bf16.msra.mxu0 %v284
    %334 = vmatprep.subr.bf16.mxu0 %v281
    %335 = vmatpush1.bf16.msra.mxu0 %v280
    %336 = vmatprep.subr.bf16.mxu0 %v277
    %337 = vmatpush1.bf16.msra.mxu0 %v276
    %338 = vmatprep.subr.bf16.mxu0 %v273
    %339 = vmatpush1.bf16.msra.mxu0 %v272
    %340 = vmatprep.subr.bf16.mxu0 %v269
    %341 = vmatpush1.bf16.msra.mxu0 %v268
    %342 = vmatprep.subr.bf16.mxu0 %v265
    %343 = vmatpush1.bf16.msra.mxu0 %v264
    %344 = vmatprep.subr.bf16.mxu0 0
    %345 = vmatpush2.bf16.msra.mxu0 0
    %346 = vmatprep.subr.bf16.mxu0 0
    %347 = vmatpush2.bf16.msra.mxu0 0
    %348 = vmatprep.subr.bf16.mxu0 0
    %349 = vmatpush2.bf16.msra.mxu0 0
    %350 = vmatprep.subr.bf16.mxu0 0
    %351 = vmatpush2.bf16.msra.mxu0 0
    %352 = vmatprep.subr.bf16.mxu0 0
    %353 = vmatpush2.bf16.msra.mxu0 0
    %354 = vmatprep.subr.bf16.mxu0 0
    %355 = vmatpush2.bf16.msra.mxu0 0
    %356 = vmatprep.subr.bf16.mxu0 0
    %357 = vmatpush2.bf16.msra.mxu0 0
    %358 = vmatprep.subr.bf16.mxu0 0
    %359 = vmatpush2.bf16.msra.mxu0 0
    %360 = vmatprep.mubr.bf16.mxu0 0
    %361 = vmatmul.mubr.bf16.gmra.mxu0 %v166
    %v362 = vpop.f32.mrf.mxu0
    %v363 = vadd.f32 %v145, %v362
    %v364 = vpop.f32.mrf.mxu0
    %v365 = vadd.f32 %v149, %v364
    %v366 = vpop.f32.mrf.mxu0
    %v367 = vadd.f32 %v145, %v366
    %v368 = vpop.f32.mrf.mxu0
    %v369 = vadd.f32 %v149, %v368
    %370 = vdwg.mxu0
    %371 = vmatprep.subr.bf16.mxu0 %v295
    %372 = vmatpush1.bf16.msra.mxu0 %v294
    %373 = vmatprep.subr.bf16.mxu0 %v291
    %374 = vmatpush1.bf16.msra.mxu0 %v290
    %375 = vmatprep.subr.bf16.mxu0 %v287
    %376 = vmatpush1.bf16.msra.mxu0 %v286
    %377 = vmatprep.subr.bf16.mxu0 %v283
    %378 = vmatpush1.bf16.msra.mxu0 %v282
    %379 = vmatprep.subr.bf16.mxu0 %v279
    %380 = vmatpush1.bf16.msra.mxu0 %v278
    %381 = vmatprep.subr.bf16.mxu0 %v275
    %382 = vmatpush1.bf16.msra.mxu0 %v274
    %383 = vmatprep.subr.bf16.mxu0 %v271
    %384 = vmatpush1.bf16.msra.mxu0 %v270
    %385 = vmatprep.subr.bf16.mxu0 %v267
    %386 = vmatpush1.bf16.msra.mxu0 %v266
    %387 = vmatprep.subr.bf16.mxu0 0
    %388 = vmatpush2.bf16.msra.mxu0 0
    %389 = vmatprep.subr.bf16.mxu0 0
    %390 = vmatpush2.bf16.msra.mxu0 0
    %391 = vmatprep.subr.bf16.mxu0 0
    %392 = vmatpush2.bf16.msra.mxu0 0
    %393 = vmatprep.subr.bf16.mxu0 0
    %394 = vmatpush2.bf16.msra.mxu0 0
    %395 = vmatprep.subr.bf16.mxu0 0
    %396 = vmatpush2.bf16.msra.mxu0 0
    %397 = vmatprep.subr.bf16.mxu0 0
    %398 = vmatpush2.bf16.msra.mxu0 0
    %399 = vmatprep.subr.bf16.mxu0 0
    %400 = vmatpush2.bf16.msra.mxu0 0
    %401 = vmatprep.subr.bf16.mxu0 0
    %402 = vmatpush2.bf16.msra.mxu0 0
    %403 = vmatprep.mubr.bf16.mxu0 0
    %404 = vmatmul.mubr.bf16.gmra.mxu0 %v166
    %v405 = vpop.f32.mrf.mxu0
    %v406 = vadd.f32 %v153, %v405
    %v407 = vpop.f32.mrf.mxu0
    %v408 = vadd.f32 %v157, %v407
    %v409 = vpop.f32.mrf.mxu0
    %v410 = vadd.f32 %v153, %v409
    %v411 = vpop.f32.mrf.mxu0
    %v412 = vadd.f32 %v157, %v411
    %413 = vdwg.mxu0
    %v414 = vmax.f32 %v363, 0.0
    %v415 = vmax.f32 %v365, 0.0
    %v416 = vmax.f32 %v406, 0.0
    %v417 = vmax.f32 %v408, 0.0
    %v418 = vmax.f32 %v367, 0.0
    %v419 = vmax.f32 %v369, 0.0
    %v420 = vmax.f32 %v410, 0.0
    %v421 = vmax.f32 %v412, 0.0
    %v422 = vpack.c.bf16 %v418, %v414
    %v423 = vpack.c.bf16 %v419, %v415
    %v424 = vpack.c.bf16 %v420, %v416
    %v425 = vpack.c.bf16 %v421, %v417
    %v426 = vld [vmem:[#allocation8] sm:$0xff]
    %v427 = vld [vmem:[#allocation8 + $0x8] sm:$0xff]
    %v428 = vld [vmem:[#allocation8 + $0x10] sm:$0xff]
    %v429 = vld [vmem:[#allocation8 + $0x18] sm:$0xff]
    %v430 = vld [vmem:[#allocation8 + $0x20] sm:$0xff]
    %v431 = vld [vmem:[#allocation8 + $0x28] sm:$0xff]
    %v432 = vld [vmem:[#allocation8 + $0x30] sm:$0xff]
    %v433 = vld [vmem:[#allocation8 + $0x38] sm:$0xff]
    %v434 = vld [vmem:[#allocation8 + $0x40] sm:$0xff]
    %v435 = vld [vmem:[#allocation8 + $0x48] sm:$0xff]
    %v436 = vld [vmem:[#allocation8 + $0x50] sm:$0xff]
    %v437 = vld [vmem:[#allocation8 + $0x58] sm:$0xff]
    %v438 = vld [vmem:[#allocation8 + $0x60] sm:$0xff]
    %v439 = vld [vmem:[#allocation8 + $0x68] sm:$0xff]
    %v440 = vld [vmem:[#allocation8 + $0x70] sm:$0xff]
    %v441 = vld [vmem:[#allocation8 + $0x78] sm:$0xff]
    %v442 = vld [vmem:[#allocation8 + $0x80] sm:$0xff]
    %v443 = vld [vmem:[#allocation8 + $0x88] sm:$0xff]
    %v444 = vld [vmem:[#allocation8 + $0x90] sm:$0xff]
    %v445 = vld [vmem:[#allocation8 + $0x98] sm:$0xff]
    %v446 = vld [vmem:[#allocation8 + $0xa0] sm:$0xff]
    %v447 = vld [vmem:[#allocation8 + $0xa8] sm:$0xff]
    %v448 = vld [vmem:[#allocation8 + $0xb0] sm:$0xff]
    %v449 = vld [vmem:[#allocation8 + $0xb8] sm:$0xff]
    %v450 = vld [vmem:[#allocation8 + $0xc0] sm:$0xff]
    %v451 = vld [vmem:[#allocation8 + $0xc8] sm:$0xff]
    %v452 = vld [vmem:[#allocation8 + $0xd0] sm:$0xff]
    %v453 = vld [vmem:[#allocation8 + $0xd8] sm:$0xff]
    %v454 = vld [vmem:[#allocation8 + $0xe0] sm:$0xff]
    %v455 = vld [vmem:[#allocation8 + $0xe8] sm:$0xff]
    %v456 = vld [vmem:[#allocation8 + $0xf0] sm:$0xff]
    %v457 = vld [vmem:[#allocation8 + $0xf8] sm:$0xff]
    %v458 = vld [vmem:[#allocation8 + $0x100] sm:$0xff]
    %v459 = vld [vmem:[#allocation8 + $0x108] sm:$0xff]
    %v460 = vld [vmem:[#allocation8 + $0x110] sm:$0xff]
    %v461 = vld [vmem:[#allocation8 + $0x118] sm:$0xff]
    %v462 = vld [vmem:[#allocation8 + $0x120] sm:$0xff]
    %v463 = vld [vmem:[#allocation8 + $0x128] sm:$0xff]
    %v464 = vld [vmem:[#allocation8 + $0x130] sm:$0xff]
    %v465 = vld [vmem:[#allocation8 + $0x138] sm:$0xff]
    %v466 = vld [vmem:[#allocation8 + $0x140] sm:$0xff]
    %v467 = vld [vmem:[#allocation8 + $0x148] sm:$0xff]
    %v468 = vld [vmem:[#allocation8 + $0x150] sm:$0xff]
    %v469 = vld [vmem:[#allocation8 + $0x158] sm:$0xff]
    %v470 = vld [vmem:[#allocation8 + $0x160] sm:$0xff]
    %v471 = vld [vmem:[#allocation8 + $0x168] sm:$0xff]
    %v472 = vld [vmem:[#allocation8 + $0x170] sm:$0xff]
    %v473 = vld [vmem:[#allocation8 + $0x178] sm:$0xff]
    %v474 = vld [vmem:[#allocation8 + $0x180] sm:$0xff]
    %v475 = vld [vmem:[#allocation8 + $0x188] sm:$0xff]
    %v476 = vld [vmem:[#allocation8 + $0x190] sm:$0xff]
    %v477 = vld [vmem:[#allocation8 + $0x198] sm:$0xff]
    %v478 = vld [vmem:[#allocation8 + $0x1a0] sm:$0xff]
    %v479 = vld [vmem:[#allocation8 + $0x1a8] sm:$0xff]
    %v480 = vld [vmem:[#allocation8 + $0x1b0] sm:$0xff]
    %v481 = vld [vmem:[#allocation8 + $0x1b8] sm:$0xff]
    %v482 = vld [vmem:[#allocation8 + $0x1c0] sm:$0xff]
    %v483 = vld [vmem:[#allocation8 + $0x1c8] sm:$0xff]
    %v484 = vld [vmem:[#allocation8 + $0x1d0] sm:$0xff]
    %v485 = vld [vmem:[#allocation8 + $0x1d8] sm:$0xff]
    %v486 = vld [vmem:[#allocation8 + $0x1e0] sm:$0xff]
    %v487 = vld [vmem:[#allocation8 + $0x1e8] sm:$0xff]
    %v488 = vld [vmem:[#allocation8 + $0x1f0] sm:$0xff]
    %v489 = vld [vmem:[#allocation8 + $0x1f8] sm:$0xff]
    %v490 = vld [vmem:[#allocation8 + $0x200] sm:$0xff]
    %v491 = vld [vmem:[#allocation8 + $0x208] sm:$0xff]
    %v492 = vld [vmem:[#allocation8 + $0x210] sm:$0xff]
    %v493 = vld [vmem:[#allocation8 + $0x218] sm:$0xff]
    %v494 = vld [vmem:[#allocation8 + $0x220] sm:$0xff]
    %v495 = vld [vmem:[#allocation8 + $0x228] sm:$0xff]
    %v496 = vld [vmem:[#allocation8 + $0x230] sm:$0xff]
    %v497 = vld [vmem:[#allocation8 + $0x238] sm:$0xff]
    %v498 = vld [vmem:[#allocation8 + $0x240] sm:$0xff]
    %v499 = vld [vmem:[#allocation8 + $0x248] sm:$0xff]
    %v500 = vld [vmem:[#allocation8 + $0x250] sm:$0xff]
    %v501 = vld [vmem:[#allocation8 + $0x258] sm:$0xff]
    %v502 = vld [vmem:[#allocation8 + $0x260] sm:$0xff]
    %v503 = vld [vmem:[#allocation8 + $0x268] sm:$0xff]
    %v504 = vld [vmem:[#allocation8 + $0x270] sm:$0xff]
    %v505 = vld [vmem:[#allocation8 + $0x278] sm:$0xff]
    %v506 = vld [vmem:[#allocation8 + $0x280] sm:$0xff]
    %v507 = vld [vmem:[#allocation8 + $0x288] sm:$0xff]
    %v508 = vld [vmem:[#allocation8 + $0x290] sm:$0xff]
    %v509 = vld [vmem:[#allocation8 + $0x298] sm:$0xff]
    %v510 = vld [vmem:[#allocation8 + $0x2a0] sm:$0xff]
    %v511 = vld [vmem:[#allocation8 + $0x2a8] sm:$0xff]
    %v512 = vld [vmem:[#allocation8 + $0x2b0] sm:$0xff]
    %v513 = vld [vmem:[#allocation8 + $0x2b8] sm:$0xff]
    %v514 = vld [vmem:[#allocation8 + $0x2c0] sm:$0xff]
    %v515 = vld [vmem:[#allocation8 + $0x2c8] sm:$0xff]
    %v516 = vld [vmem:[#allocation8 + $0x2d0] sm:$0xff]
    %v517 = vld [vmem:[#allocation8 + $0x2d8] sm:$0xff]
    %v518 = vld [vmem:[#allocation8 + $0x2e0] sm:$0xff]
    %v519 = vld [vmem:[#allocation8 + $0x2e8] sm:$0xff]
    %v520 = vld [vmem:[#allocation8 + $0x2f0] sm:$0xff]
    %v521 = vld [vmem:[#allocation8 + $0x2f8] sm:$0xff]
    %v522 = vld [vmem:[#allocation8 + $0x300] sm:$0xff]
    %v523 = vld [vmem:[#allocation8 + $0x308] sm:$0xff]
    %v524 = vld [vmem:[#allocation8 + $0x310] sm:$0xff]
    %v525 = vld [vmem:[#allocation8 + $0x318] sm:$0xff]
    %v526 = vld [vmem:[#allocation8 + $0x320] sm:$0xff]
    %v527 = vld [vmem:[#allocation8 + $0x328] sm:$0xff]
    %v528 = vld [vmem:[#allocation8 + $0x330] sm:$0xff]
    %v529 = vld [vmem:[#allocation8 + $0x338] sm:$0xff]
    %v530 = vld [vmem:[#allocation8 + $0x340] sm:$0xff]
    %v531 = vld [vmem:[#allocation8 + $0x348] sm:$0xff]
    %v532 = vld [vmem:[#allocation8 + $0x350] sm:$0xff]
    %v533 = vld [vmem:[#allocation8 + $0x358] sm:$0xff]
    %v534 = vld [vmem:[#allocation8 + $0x360] sm:$0xff]
    %v535 = vld [vmem:[#allocation8 + $0x368] sm:$0xff]
    %v536 = vld [vmem:[#allocation8 + $0x370] sm:$0xff]
    %v537 = vld [vmem:[#allocation8 + $0x378] sm:$0xff]
    %v538 = vld [vmem:[#allocation8 + $0x380] sm:$0xff]
    %v539 = vld [vmem:[#allocation8 + $0x388] sm:$0xff]
    %v540 = vld [vmem:[#allocation8 + $0x390] sm:$0xff]
    %v541 = vld [vmem:[#allocation8 + $0x398] sm:$0xff]
    %v542 = vld [vmem:[#allocation8 + $0x3a0] sm:$0xff]
    %v543 = vld [vmem:[#allocation8 + $0x3a8] sm:$0xff]
    %v544 = vld [vmem:[#allocation8 + $0x3b0] sm:$0xff]
    %v545 = vld [vmem:[#allocation8 + $0x3b8] sm:$0xff]
    %v546 = vld [vmem:[#allocation8 + $0x3c0] sm:$0xff]
    %v547 = vld [vmem:[#allocation8 + $0x3c8] sm:$0xff]
    %v548 = vld [vmem:[#allocation8 + $0x3d0] sm:$0xff]
    %v549 = vld [vmem:[#allocation8 + $0x3d8] sm:$0xff]
    %v550 = vld [vmem:[#allocation8 + $0x3e0] sm:$0xff]
    %v551 = vld [vmem:[#allocation8 + $0x3e8] sm:$0xff]
    %v552 = vld [vmem:[#allocation8 + $0x3f0] sm:$0xff]
    %v553 = vld [vmem:[#allocation8 + $0x3f8] sm:$0xff]
    %v554 = vld [vmem:[#allocation10] sm:$0xf]
    %v556 = vlaneseq
    %v557 = vshrl.u32 %v556, 7
    %v558 = vsub.s32 0, %v557
    %v559 = vrot.slane %v554, %v558
    %v560 = vlaneseq
    %v561 = vshrl.u32 %v560, 7
    %v562 = vsub.s32 1, %v561
    %v563 = vrot.slane %v554, %v562
    %v564 = vlaneseq
    %v565 = vshrl.u32 %v564, 7
    %v566 = vsub.s32 2, %v565
    %v567 = vrot.slane %v554, %v566
    %v568 = vlaneseq
    %v569 = vshrl.u32 %v568, 7
    %v570 = vsub.s32 3, %v569
    %v571 = vrot.slane %v554, %v570
    %v704 = vunpack.c.l.b16 %v426
    %v705 = vunpack.c.h.b16 %v426
    %v706 = vunpack.c.l.b16 %v427
    %v707 = vunpack.c.h.b16 %v427
    %v708 = vunpack.c.l.b16 %v428
    %v709 = vunpack.c.h.b16 %v428
    %v710 = vunpack.c.l.b16 %v429
    %v711 = vunpack.c.h.b16 %v429
    %v712 = vunpack.c.l.b16 %v430
    %v713 = vunpack.c.h.b16 %v430
    %v714 = vunpack.c.l.b16 %v431
    %v715 = vunpack.c.h.b16 %v431
    %v716 = vunpack.c.l.b16 %v432
    %v717 = vunpack.c.h.b16 %v432
    %v718 = vunpack.c.l.b16 %v433
    %v719 = vunpack.c.h.b16 %v433
    %v720 = vunpack.c.l.b16 %v434
    %v721 = vunpack.c.h.b16 %v434
    %v722 = vunpack.c.l.b16 %v435
    %v723 = vunpack.c.h.b16 %v435
    %v724 = vunpack.c.l.b16 %v436
    %v725 = vunpack.c.h.b16 %v436
    %v726 = vunpack.c.l.b16 %v437
    %v727 = vunpack.c.h.b16 %v437
    %v728 = vunpack.c.l.b16 %v438
    %v729 = vunpack.c.h.b16 %v438
    %v730 = vunpack.c.l.b16 %v439
    %v731 = vunpack.c.h.b16 %v439
    %v732 = vunpack.c.l.b16 %v440
    %v733 = vunpack.c.h.b16 %v440
    %v734 = vunpack.c.l.b16 %v441
    %v735 = vunpack.c.h.b16 %v441
    %v736 = vunpack.c.l.b16 %v442
    %v737 = vunpack.c.h.b16 %v442
    %v738 = vunpack.c.l.b16 %v443
    %v739 = vunpack.c.h.b16 %v443
    %v740 = vunpack.c.l.b16 %v444
    %v741 = vunpack.c.h.b16 %v444
    %v742 = vunpack.c.l.b16 %v445
    %v743 = vunpack.c.h.b16 %v445
    %v744 = vunpack.c.l.b16 %v446
    %v745 = vunpack.c.h.b16 %v446
    %v746 = vunpack.c.l.b16 %v447
    %v747 = vunpack.c.h.b16 %v447
    %v748 = vunpack.c.l.b16 %v448
    %v749 = vunpack.c.h.b16 %v448
    %v750 = vunpack.c.l.b16 %v449
    %v751 = vunpack.c.h.b16 %v449
    %v752 = vunpack.c.l.b16 %v450
    %v753 = vunpack.c.h.b16 %v450
    %v754 = vunpack.c.l.b16 %v451
    %v755 = vunpack.c.h.b16 %v451
    %v756 = vunpack.c.l.b16 %v452
    %v757 = vunpack.c.h.b16 %v452
    %v758 = vunpack.c.l.b16 %v453
    %v759 = vunpack.c.h.b16 %v453
    %v760 = vunpack.c.l.b16 %v454
    %v761 = vunpack.c.h.b16 %v454
    %v762 = vunpack.c.l.b16 %v455
    %v763 = vunpack.c.h.b16 %v455
    %v764 = vunpack.c.l.b16 %v456
    %v765 = vunpack.c.h.b16 %v456
    %v766 = vunpack.c.l.b16 %v457
    %v767 = vunpack.c.h.b16 %v457
    %v768 = vunpack.c.l.b16 %v458
    %v769 = vunpack.c.h.b16 %v458
    %v770 = vunpack.c.l.b16 %v459
    %v771 = vunpack.c.h.b16 %v459
    %v772 = vunpack.c.l.b16 %v460
    %v773 = vunpack.c.h.b16 %v460
    %v774 = vunpack.c.l.b16 %v461
    %v775 = vunpack.c.h.b16 %v461
    %v776 = vunpack.c.l.b16 %v462
    %v777 = vunpack.c.h.b16 %v462
    %v778 = vunpack.c.l.b16 %v463
    %v779 = vunpack.c.h.b16 %v463
    %v780 = vunpack.c.l.b16 %v464
    %v781 = vunpack.c.h.b16 %v464
    %v782 = vunpack.c.l.b16 %v465
    %v783 = vunpack.c.h.b16 %v465
    %v784 = vunpack.c.l.b16 %v466
    %v785 = vunpack.c.h.b16 %v466
    %v786 = vunpack.c.l.b16 %v467
    %v787 = vunpack.c.h.b16 %v467
    %v788 = vunpack.c.l.b16 %v468
    %v789 = vunpack.c.h.b16 %v468
    %v790 = vunpack.c.l.b16 %v469
    %v791 = vunpack.c.h.b16 %v469
    %v792 = vunpack.c.l.b16 %v470
    %v793 = vunpack.c.h.b16 %v470
    %v794 = vunpack.c.l.b16 %v471
    %v795 = vunpack.c.h.b16 %v471
    %v796 = vunpack.c.l.b16 %v472
    %v797 = vunpack.c.h.b16 %v472
    %v798 = vunpack.c.l.b16 %v473
    %v799 = vunpack.c.h.b16 %v473
    %v800 = vunpack.c.l.b16 %v474
    %v801 = vunpack.c.h.b16 %v474
    %v802 = vunpack.c.l.b16 %v475
    %v803 = vunpack.c.h.b16 %v475
    %v804 = vunpack.c.l.b16 %v476
    %v805 = vunpack.c.h.b16 %v476
    %v806 = vunpack.c.l.b16 %v477
    %v807 = vunpack.c.h.b16 %v477
    %v808 = vunpack.c.l.b16 %v478
    %v809 = vunpack.c.h.b16 %v478
    %v810 = vunpack.c.l.b16 %v479
    %v811 = vunpack.c.h.b16 %v479
    %v812 = vunpack.c.l.b16 %v480
    %v813 = vunpack.c.h.b16 %v480
    %v814 = vunpack.c.l.b16 %v481
    %v815 = vunpack.c.h.b16 %v481
    %v816 = vunpack.c.l.b16 %v482
    %v817 = vunpack.c.h.b16 %v482
    %v818 = vunpack.c.l.b16 %v483
    %v819 = vunpack.c.h.b16 %v483
    %v820 = vunpack.c.l.b16 %v484
    %v821 = vunpack.c.h.b16 %v484
    %v822 = vunpack.c.l.b16 %v485
    %v823 = vunpack.c.h.b16 %v485
    %v824 = vunpack.c.l.b16 %v486
    %v825 = vunpack.c.h.b16 %v486
    %v826 = vunpack.c.l.b16 %v487
    %v827 = vunpack.c.h.b16 %v487
    %v828 = vunpack.c.l.b16 %v488
    %v829 = vunpack.c.h.b16 %v488
    %v830 = vunpack.c.l.b16 %v489
    %v831 = vunpack.c.h.b16 %v489
    %v832 = vunpack.c.l.b16 %v490
    %v833 = vunpack.c.h.b16 %v490
    %v834 = vunpack.c.l.b16 %v491
    %v835 = vunpack.c.h.b16 %v491
    %v836 = vunpack.c.l.b16 %v492
    %v837 = vunpack.c.h.b16 %v492
    %v838 = vunpack.c.l.b16 %v493
    %v839 = vunpack.c.h.b16 %v493
    %v840 = vunpack.c.l.b16 %v494
    %v841 = vunpack.c.h.b16 %v494
    %v842 = vunpack.c.l.b16 %v495
    %v843 = vunpack.c.h.b16 %v495
    %v844 = vunpack.c.l.b16 %v496
    %v845 = vunpack.c.h.b16 %v496
    %v846 = vunpack.c.l.b16 %v497
    %v847 = vunpack.c.h.b16 %v497
    %v848 = vunpack.c.l.b16 %v498
    %v849 = vunpack.c.h.b16 %v498
    %v850 = vunpack.c.l.b16 %v499
    %v851 = vunpack.c.h.b16 %v499
    %v852 = vunpack.c.l.b16 %v500
    %v853 = vunpack.c.h.b16 %v500
    %v854 = vunpack.c.l.b16 %v501
    %v855 = vunpack.c.h.b16 %v501
    %v856 = vunpack.c.l.b16 %v502
    %v857 = vunpack.c.h.b16 %v502
    %v858 = vunpack.c.l.b16 %v503
    %v859 = vunpack.c.h.b16 %v503
    %v860 = vunpack.c.l.b16 %v504
    %v861 = vunpack.c.h.b16 %v504
    %v862 = vunpack.c.l.b16 %v505
    %v863 = vunpack.c.h.b16 %v505
    %v864 = vunpack.c.l.b16 %v506
    %v865 = vunpack.c.h.b16 %v506
    %v866 = vunpack.c.l.b16 %v507
    %v867 = vunpack.c.h.b16 %v507
    %v868 = vunpack.c.l.b16 %v508
    %v869 = vunpack.c.h.b16 %v508
    %v870 = vunpack.c.l.b16 %v509
    %v871 = vunpack.c.h.b16 %v509
    %v872 = vunpack.c.l.b16 %v510
    %v873 = vunpack.c.h.b16 %v510
    %v874 = vunpack.c.l.b16 %v511
    %v875 = vunpack.c.h.b16 %v511
    %v876 = vunpack.c.l.b16 %v512
    %v877 = vunpack.c.h.b16 %v512
    %v878 = vunpack.c.l.b16 %v513
    %v879 = vunpack.c.h.b16 %v513
    %v880 = vunpack.c.l.b16 %v514
    %v881 = vunpack.c.h.b16 %v514
    %v882 = vunpack.c.l.b16 %v515
    %v883 = vunpack.c.h.b16 %v515
    %v884 = vunpack.c.l.b16 %v516
    %v885 = vunpack.c.h.b16 %v516
    %v886 = vunpack.c.l.b16 %v517
    %v887 = vunpack.c.h.b16 %v517
    %v888 = vunpack.c.l.b16 %v518
    %v889 = vunpack.c.h.b16 %v518
    %v890 = vunpack.c.l.b16 %v519
    %v891 = vunpack.c.h.b16 %v519
    %v892 = vunpack.c.l.b16 %v520
    %v893 = vunpack.c.h.b16 %v520
    %v894 = vunpack.c.l.b16 %v521
    %v895 = vunpack.c.h.b16 %v521
    %v896 = vunpack.c.l.b16 %v522
    %v897 = vunpack.c.h.b16 %v522
    %v898 = vunpack.c.l.b16 %v523
    %v899 = vunpack.c.h.b16 %v523
    %v900 = vunpack.c.l.b16 %v524
    %v901 = vunpack.c.h.b16 %v524
    %v902 = vunpack.c.l.b16 %v525
    %v903 = vunpack.c.h.b16 %v525
    %v904 = vunpack.c.l.b16 %v526
    %v905 = vunpack.c.h.b16 %v526
    %v906 = vunpack.c.l.b16 %v527
    %v907 = vunpack.c.h.b16 %v527
    %v908 = vunpack.c.l.b16 %v528
    %v909 = vunpack.c.h.b16 %v528
    %v910 = vunpack.c.l.b16 %v529
    %v911 = vunpack.c.h.b16 %v529
    %v912 = vunpack.c.l.b16 %v530
    %v913 = vunpack.c.h.b16 %v530
    %v914 = vunpack.c.l.b16 %v531
    %v915 = vunpack.c.h.b16 %v531
    %v916 = vunpack.c.l.b16 %v532
    %v917 = vunpack.c.h.b16 %v532
    %v918 = vunpack.c.l.b16 %v533
    %v919 = vunpack.c.h.b16 %v533
    %v920 = vunpack.c.l.b16 %v534
    %v921 = vunpack.c.h.b16 %v534
    %v922 = vunpack.c.l.b16 %v535
    %v923 = vunpack.c.h.b16 %v535
    %v924 = vunpack.c.l.b16 %v536
    %v925 = vunpack.c.h.b16 %v536
    %v926 = vunpack.c.l.b16 %v537
    %v927 = vunpack.c.h.b16 %v537
    %v928 = vunpack.c.l.b16 %v538
    %v929 = vunpack.c.h.b16 %v538
    %v930 = vunpack.c.l.b16 %v539
    %v931 = vunpack.c.h.b16 %v539
    %v932 = vunpack.c.l.b16 %v540
    %v933 = vunpack.c.h.b16 %v540
    %v934 = vunpack.c.l.b16 %v541
    %v935 = vunpack.c.h.b16 %v541
    %v936 = vunpack.c.l.b16 %v542
    %v937 = vunpack.c.h.b16 %v542
    %v938 = vunpack.c.l.b16 %v543
    %v939 = vunpack.c.h.b16 %v543
    %v940 = vunpack.c.l.b16 %v544
    %v941 = vunpack.c.h.b16 %v544
    %v942 = vunpack.c.l.b16 %v545
    %v943 = vunpack.c.h.b16 %v545
    %v944 = vunpack.c.l.b16 %v546
    %v945 = vunpack.c.h.b16 %v546
    %v946 = vunpack.c.l.b16 %v547
    %v947 = vunpack.c.h.b16 %v547
    %v948 = vunpack.c.l.b16 %v548
    %v949 = vunpack.c.h.b16 %v548
    %v950 = vunpack.c.l.b16 %v549
    %v951 = vunpack.c.h.b16 %v549
    %v952 = vunpack.c.l.b16 %v550
    %v953 = vunpack.c.h.b16 %v550
    %v954 = vunpack.c.l.b16 %v551
    %v955 = vunpack.c.h.b16 %v551
    %v956 = vunpack.c.l.b16 %v552
    %v957 = vunpack.c.h.b16 %v552
    %v958 = vunpack.c.l.b16 %v553
    %v959 = vunpack.c.h.b16 %v553
    %v960 = vpack.c.b16 %v708, %v704
    %v961 = vpack.c.b16 %v709, %v705
    %v962 = vpack.c.b16 %v710, %v706
    %v963 = vpack.c.b16 %v711, %v707
    %v964 = vpack.c.b16 %v716, %v712
    %v965 = vpack.c.b16 %v717, %v713
    %v966 = vpack.c.b16 %v718, %v714
    %v967 = vpack.c.b16 %v719, %v715
    %v968 = vpack.c.b16 %v724, %v720
    %v969 = vpack.c.b16 %v725, %v721
    %v970 = vpack.c.b16 %v726, %v722
    %v971 = vpack.c.b16 %v727, %v723
    %v972 = vpack.c.b16 %v732, %v728
    %v973 = vpack.c.b16 %v733, %v729
    %v974 = vpack.c.b16 %v734, %v730
    %v975 = vpack.c.b16 %v735, %v731
    %v976 = vpack.c.b16 %v740, %v736
    %v977 = vpack.c.b16 %v741, %v737
    %v978 = vpack.c.b16 %v742, %v738
    %v979 = vpack.c.b16 %v743, %v739
    %v980 = vpack.c.b16 %v748, %v744
    %v981 = vpack.c.b16 %v749, %v745
    %v982 = vpack.c.b16 %v750, %v746
    %v983 = vpack.c.b16 %v751, %v747
    %v984 = vpack.c.b16 %v756, %v752
    %v985 = vpack.c.b16 %v757, %v753
    %v986 = vpack.c.b16 %v758, %v754
    %v987 = vpack.c.b16 %v759, %v755
    %v988 = vpack.c.b16 %v764, %v760
    %v989 = vpack.c.b16 %v765, %v761
    %v990 = vpack.c.b16 %v766, %v762
    %v991 = vpack.c.b16 %v767, %v763
    %v992 = vpack.c.b16 %v772, %v768
    %v993 = vpack.c.b16 %v773, %v769
    %v994 = vpack.c.b16 %v774, %v770
    %v995 = vpack.c.b16 %v775, %v771
    %v996 = vpack.c.b16 %v780, %v776
    %v997 = vpack.c.b16 %v781, %v777
    %v998 = vpack.c.b16 %v782, %v778
    %v999 = vpack.c.b16 %v783, %v779
    %v1000 = vpack.c.b16 %v788, %v784
    %v1001 = vpack.c.b16 %v789, %v785
    %v1002 = vpack.c.b16 %v790, %v786
    %v1003 = vpack.c.b16 %v791, %v787
    %v1004 = vpack.c.b16 %v796, %v792
    %v1005 = vpack.c.b16 %v797, %v793
    %v1006 = vpack.c.b16 %v798, %v794
    %v1007 = vpack.c.b16 %v799, %v795
    %v1008 = vpack.c.b16 %v804, %v800
    %v1009 = vpack.c.b16 %v805, %v801
    %v1010 = vpack.c.b16 %v806, %v802
    %v1011 = vpack.c.b16 %v807, %v803
    %v1012 = vpack.c.b16 %v812, %v808
    %v1013 = vpack.c.b16 %v813, %v809
    %v1014 = vpack.c.b16 %v814, %v810
    %v1015 = vpack.c.b16 %v815, %v811
    %v1016 = vpack.c.b16 %v820, %v816
    %v1017 = vpack.c.b16 %v821, %v817
    %v1018 = vpack.c.b16 %v822, %v818
    %v1019 = vpack.c.b16 %v823, %v819
    %v1020 = vpack.c.b16 %v828, %v824
    %v1021 = vpack.c.b16 %v829, %v825
    %v1022 = vpack.c.b16 %v830, %v826
    %v1023 = vpack.c.b16 %v831, %v827
    %v1024 = vpack.c.b16 %v836, %v832
    %v1025 = vpack.c.b16 %v837, %v833
    %v1026 = vpack.c.b16 %v838, %v834
    %v1027 = vpack.c.b16 %v839, %v835
    %v1028 = vpack.c.b16 %v844, %v840
    %v1029 = vpack.c.b16 %v845, %v841
    %v1030 = vpack.c.b16 %v846, %v842
    %v1031 = vpack.c.b16 %v847, %v843
    %v1032 = vpack.c.b16 %v852, %v848
    %v1033 = vpack.c.b16 %v853, %v849
    %v1034 = vpack.c.b16 %v854, %v850
    %v1035 = vpack.c.b16 %v855, %v851
    %v1036 = vpack.c.b16 %v860, %v856
    %v1037 = vpack.c.b16 %v861, %v857
    %v1038 = vpack.c.b16 %v862, %v858
    %v1039 = vpack.c.b16 %v863, %v859
    %v1040 = vpack.c.b16 %v868, %v864
    %v1041 = vpack.c.b16 %v869, %v865
    %v1042 = vpack.c.b16 %v870, %v866
    %v1043 = vpack.c.b16 %v871, %v867
    %v1044 = vpack.c.b16 %v876, %v872
    %v1045 = vpack.c.b16 %v877, %v873
    %v1046 = vpack.c.b16 %v878, %v874
    %v1047 = vpack.c.b16 %v879, %v875
    %v1048 = vpack.c.b16 %v884, %v880
    %v1049 = vpack.c.b16 %v885, %v881
    %v1050 = vpack.c.b16 %v886, %v882
    %v1051 = vpack.c.b16 %v887, %v883
    %v1052 = vpack.c.b16 %v892, %v888
    %v1053 = vpack.c.b16 %v893, %v889
    %v1054 = vpack.c.b16 %v894, %v890
    %v1055 = vpack.c.b16 %v895, %v891
    %v1056 = vpack.c.b16 %v900, %v896
    %v1057 = vpack.c.b16 %v901, %v897
    %v1058 = vpack.c.b16 %v902, %v898
    %v1059 = vpack.c.b16 %v903, %v899
    %v1060 = vpack.c.b16 %v908, %v904
    %v1061 = vpack.c.b16 %v909, %v905
    %v1062 = vpack.c.b16 %v910, %v906
    %v1063 = vpack.c.b16 %v911, %v907
    %v1064 = vpack.c.b16 %v916, %v912
    %v1065 = vpack.c.b16 %v917, %v913
    %v1066 = vpack.c.b16 %v918, %v914
    %v1067 = vpack.c.b16 %v919, %v915
    %v1068 = vpack.c.b16 %v924, %v920
    %v1069 = vpack.c.b16 %v925, %v921
    %v1070 = vpack.c.b16 %v926, %v922
    %v1071 = vpack.c.b16 %v927, %v923
    %v1072 = vpack.c.b16 %v932, %v928
    %v1073 = vpack.c.b16 %v933, %v929
    %v1074 = vpack.c.b16 %v934, %v930
    %v1075 = vpack.c.b16 %v935, %v931
    %v1076 = vpack.c.b16 %v940, %v936
    %v1077 = vpack.c.b16 %v941, %v937
    %v1078 = vpack.c.b16 %v942, %v938
    %v1079 = vpack.c.b16 %v943, %v939
    %v1080 = vpack.c.b16 %v948, %v944
    %v1081 = vpack.c.b16 %v949, %v945
    %v1082 = vpack.c.b16 %v950, %v946
    %v1083 = vpack.c.b16 %v951, %v947
    %v1084 = vpack.c.b16 %v956, %v952
    %v1085 = vpack.c.b16 %v957, %v953
    %v1086 = vpack.c.b16 %v958, %v954
    %v1087 = vpack.c.b16 %v959, %v955
    %1216 = vmatprep.subr.bf16.mxu0 %v989
    %1217 = vmatpush1.bf16.msra.mxu0 %v988
    %1218 = vmatprep.subr.bf16.mxu0 %v985
    %1219 = vmatpush1.bf16.msra.mxu0 %v984
    %1220 = vmatprep.subr.bf16.mxu0 %v981
    %1221 = vmatpush1.bf16.msra.mxu0 %v980
    %1222 = vmatprep.subr.bf16.mxu0 %v977
    %1223 = vmatpush1.bf16.msra.mxu0 %v976
    %1224 = vmatprep.subr.bf16.mxu0 %v973
    %1225 = vmatpush1.bf16.msra.mxu0 %v972
    %1226 = vmatprep.subr.bf16.mxu0 %v969
    %1227 = vmatpush1.bf16.msra.mxu0 %v968
    %1228 = vmatprep.subr.bf16.mxu0 %v965
    %1229 = vmatpush1.bf16.msra.mxu0 %v964
    %1230 = vmatprep.subr.bf16.mxu0 %v961
    %1231 = vmatpush1.bf16.msra.mxu0 %v960
    %1232 = vmatprep.subr.bf16.mxu0 %v1021
    %1233 = vmatpush2.bf16.msra.mxu0 %v1020
    %1234 = vmatprep.subr.bf16.mxu0 %v1017
    %1235 = vmatpush2.bf16.msra.mxu0 %v1016
    %1236 = vmatprep.subr.bf16.mxu0 %v1013
    %1237 = vmatpush2.bf16.msra.mxu0 %v1012
    %1238 = vmatprep.subr.bf16.mxu0 %v1009
    %1239 = vmatpush2.bf16.msra.mxu0 %v1008
    %1240 = vmatprep.subr.bf16.mxu0 %v1005
    %1241 = vmatpush2.bf16.msra.mxu0 %v1004
    %1242 = vmatprep.subr.bf16.mxu0 %v1001
    %1243 = vmatpush2.bf16.msra.mxu0 %v1000
    %1244 = vmatprep.subr.bf16.mxu0 %v997
    %1245 = vmatpush2.bf16.msra.mxu0 %v996
    %1246 = vmatprep.subr.bf16.mxu0 %v993
    %1247 = vmatpush2.bf16.msra.mxu0 %v992
    %1248 = vmatprep.mubr.bf16.mxu0 %v423
    %1249 = vmatmul.mubr.bf16.gmra.mxu0 %v422
    %v1250 = vpop.f32.mrf.mxu0
    %v1251 = vadd.f32 %v559, %v1250
    %v1252 = vpop.f32.mrf.mxu0
    %v1253 = vadd.f32 %v563, %v1252
    %v1254 = vpop.f32.mrf.mxu0
    %v1255 = vadd.f32 %v559, %v1254
    %v1256 = vpop.f32.mrf.mxu0
    %v1257 = vadd.f32 %v563, %v1256
    %1258 = vdwg.mxu0
    %1259 = vmatprep.subr.bf16.mxu0 %v1053
    %1260 = vmatpush1.bf16.msra.mxu0 %v1052
    %1261 = vmatprep.subr.bf16.mxu0 %v1049
    %1262 = vmatpush1.bf16.msra.mxu0 %v1048
    %1263 = vmatprep.subr.bf16.mxu0 %v1045
    %1264 = vmatpush1.bf16.msra.mxu0 %v1044
    %1265 = vmatprep.subr.bf16.mxu0 %v1041
    %1266 = vmatpush1.bf16.msra.mxu0 %v1040
    %1267 = vmatprep.subr.bf16.mxu0 %v1037
    %1268 = vmatpush1.bf16.msra.mxu0 %v1036
    %1269 = vmatprep.subr.bf16.mxu0 %v1033
    %1270 = vmatpush1.bf16.msra.mxu0 %v1032
    %1271 = vmatprep.subr.bf16.mxu0 %v1029
    %1272 = vmatpush1.bf16.msra.mxu0 %v1028
    %1273 = vmatprep.subr.bf16.mxu0 %v1025
    %1274 = vmatpush1.bf16.msra.mxu0 %v1024
    %1275 = vmatprep.subr.bf16.mxu0 %v1085
    %1276 = vmatpush2.bf16.msra.mxu0 %v1084
    %1277 = vmatprep.subr.bf16.mxu0 %v1081
    %1278 = vmatpush2.bf16.msra.mxu0 %v1080
    %1279 = vmatprep.subr.bf16.mxu0 %v1077
    %1280 = vmatpush2.bf16.msra.mxu0 %v1076
    %1281 = vmatprep.subr.bf16.mxu0 %v1073
    %1282 = vmatpush2.bf16.msra.mxu0 %v1072
    %1283 = vmatprep.subr.bf16.mxu0 %v1069
    %1284 = vmatpush2.bf16.msra.mxu0 %v1068
    %1285 = vmatprep.subr.bf16.mxu0 %v1065
    %1286 = vmatpush2.bf16.msra.mxu0 %v1064
    %1287 = vmatprep.subr.bf16.mxu0 %v1061
    %1288 = vmatpush2.bf16.msra.mxu0 %v1060
    %1289 = vmatprep.subr.bf16.mxu0 %v1057
    %1290 = vmatpush2.bf16.msra.mxu0 %v1056
    %1291 = vmatprep.mubr.bf16.mxu0 %v425
    %1292 = vmatmul.mubr.bf16.gmra.mxu0 %v424
    %v1293 = vpop.f32.mrf.mxu0
    %v1294 = vadd.f32 %v1251, %v1293
    %v1295 = vpop.f32.mrf.mxu0
    %v1296 = vadd.f32 %v1253, %v1295
    %v1297 = vpop.f32.mrf.mxu0
    %v1298 = vadd.f32 %v1255, %v1297
    %v1299 = vpop.f32.mrf.mxu0
    %v1300 = vadd.f32 %v1257, %v1299
    %1301 = vdwg.mxu0
    %1302 = vmatprep.subr.bf16.mxu0 %v991
    %1303 = vmatpush1.bf16.msra.mxu0 %v990
    %1304 = vmatprep.subr.bf16.mxu0 %v987
    %1305 = vmatpush1.bf16.msra.mxu0 %v986
    %1306 = vmatprep.subr.bf16.mxu0 %v983
    %1307 = vmatpush1.bf16.msra.mxu0 %v982
    %1308 = vmatprep.subr.bf16.mxu0 %v979
    %1309 = vmatpush1.bf16.msra.mxu0 %v978
    %1310 = vmatprep.subr.bf16.mxu0 %v975
    %1311 = vmatpush1.bf16.msra.mxu0 %v974
    %1312 = vmatprep.subr.bf16.mxu0 %v971
    %1313 = vmatpush1.bf16.msra.mxu0 %v970
    %1314 = vmatprep.subr.bf16.mxu0 %v967
    %1315 = vmatpush1.bf16.msra.mxu0 %v966
    %1316 = vmatprep.subr.bf16.mxu0 %v963
    %1317 = vmatpush1.bf16.msra.mxu0 %v962
    %1318 = vmatprep.subr.bf16.mxu0 %v1023
    %1319 = vmatpush2.bf16.msra.mxu0 %v1022
    %1320 = vmatprep.subr.bf16.mxu0 %v1019
    %1321 = vmatpush2.bf16.msra.mxu0 %v1018
    %1322 = vmatprep.subr.bf16.mxu0 %v1015
    %1323 = vmatpush2.bf16.msra.mxu0 %v1014
    %1324 = vmatprep.subr.bf16.mxu0 %v1011
    %1325 = vmatpush2.bf16.msra.mxu0 %v1010
    %1326 = vmatprep.subr.bf16.mxu0 %v1007
    %1327 = vmatpush2.bf16.msra.mxu0 %v1006
    %1328 = vmatprep.subr.bf16.mxu0 %v1003
    %1329 = vmatpush2.bf16.msra.mxu0 %v1002
    %1330 = vmatprep.subr.bf16.mxu0 %v999
    %1331 = vmatpush2.bf16.msra.mxu0 %v998
    %1332 = vmatprep.subr.bf16.mxu0 %v995
    %1333 = vmatpush2.bf16.msra.mxu0 %v994
    %1334 = vmatprep.mubr.bf16.mxu0 %v423
    %1335 = vmatmul.mubr.bf16.gmra.mxu0 %v422
    %v1336 = vpop.f32.mrf.mxu0
    %v1337 = vadd.f32 %v567, %v1336
    %v1338 = vpop.f32.mrf.mxu0
    %v1339 = vadd.f32 %v571, %v1338
    %v1340 = vpop.f32.mrf.mxu0
    %v1341 = vadd.f32 %v567, %v1340
    %v1342 = vpop.f32.mrf.mxu0
    %v1343 = vadd.f32 %v571, %v1342
    %1344 = vdwg.mxu0
    %1345 = vmatprep.subr.bf16.mxu0 %v1055
    %1346 = vmatpush1.bf16.msra.mxu0 %v1054
    %1347 = vmatprep.subr.bf16.mxu0 %v1051
    %1348 = vmatpush1.bf16.msra.mxu0 %v1050
    %1349 = vmatprep.subr.bf16.mxu0 %v1047
    %1350 = vmatpush1.bf16.msra.mxu0 %v1046
    %1351 = vmatprep.subr.bf16.mxu0 %v1043
    %1352 = vmatpush1.bf16.msra.mxu0 %v1042
    %1353 = vmatprep.subr.bf16.mxu0 %v1039
    %1354 = vmatpush1.bf16.msra.mxu0 %v1038
    %1355 = vmatprep.subr.bf16.mxu0 %v1035
    %1356 = vmatpush1.bf16.msra.mxu0 %v1034
    %1357 = vmatprep.subr.bf16.mxu0 %v1031
    %1358 = vmatpush1.bf16.msra.mxu0 %v1030
    %1359 = vmatprep.subr.bf16.mxu0 %v1027
    %1360 = vmatpush1.bf16.msra.mxu0 %v1026
    %1361 = vmatprep.subr.bf16.mxu0 %v1087
    %1362 = vmatpush2.bf16.msra.mxu0 %v1086
    %1363 = vmatprep.subr.bf16.mxu0 %v1083
    %1364 = vmatpush2.bf16.msra.mxu0 %v1082
    %1365 = vmatprep.subr.bf16.mxu0 %v1079
    %1366 = vmatpush2.bf16.msra.mxu0 %v1078
    %1367 = vmatprep.subr.bf16.mxu0 %v1075
    %1368 = vmatpush2.bf16.msra.mxu0 %v1074
    %1369 = vmatprep.subr.bf16.mxu0 %v1071
    %1370 = vmatpush2.bf16.msra.mxu0 %v1070
    %1371 = vmatprep.subr.bf16.mxu0 %v1067
    %1372 = vmatpush2.bf16.msra.mxu0 %v1066
    %1373 = vmatprep.subr.bf16.mxu0 %v1063
    %1374 = vmatpush2.bf16.msra.mxu0 %v1062
    %1375 = vmatprep.subr.bf16.mxu0 %v1059
    %1376 = vmatpush2.bf16.msra.mxu0 %v1058
    %1377 = vmatprep.mubr.bf16.mxu0 %v425
    %1378 = vmatmul.mubr.bf16.gmra.mxu0 %v424
    %v1379 = vpop.f32.mrf.mxu0
    %v1380 = vadd.f32 %v1337, %v1379
    %v1381 = vpop.f32.mrf.mxu0
    %v1382 = vadd.f32 %v1339, %v1381
    %v1383 = vpop.f32.mrf.mxu0
    %v1384 = vadd.f32 %v1341, %v1383
    %v1385 = vpop.f32.mrf.mxu0
    %v1386 = vadd.f32 %v1343, %v1385
    %1387 = vdwg.mxu0
    %v1388 = vmax.f32 %v1294, 0.0
    %v1389 = vmax.f32 %v1296, 0.0
    %v1390 = vmax.f32 %v1380, 0.0
    %v1391 = vmax.f32 %v1382, 0.0
    %v1392 = vmax.f32 %v1298, 0.0
    %v1393 = vmax.f32 %v1300, 0.0
    %v1394 = vmax.f32 %v1384, 0.0
    %v1395 = vmax.f32 %v1386, 0.0
    %v1396 = vpack.c.bf16 %v1392, %v1388
    %v1397 = vpack.c.bf16 %v1393, %v1389
    %v1398 = vpack.c.bf16 %v1394, %v1390
    %v1399 = vpack.c.bf16 %v1395, %v1391
    %v1400 = vld [vmem:[#allocation11] sm:$0xff]
    %v1401 = vld [vmem:[#allocation11 + $0x8] sm:$0xff]
    %v1402 = vld [vmem:[#allocation11 + $0x10] sm:$0xff]
    %v1403 = vld [vmem:[#allocation11 + $0x18] sm:$0xf]
    %v1404 = vld [vmem:[#allocation11 + $0x1c] sm:$0xff]
    %v1405 = vld [vmem:[#allocation11 + $0x24] sm:$0xff]
    %v1406 = vld [vmem:[#allocation11 + $0x2c] sm:$0xff]
    %v1407 = vld [vmem:[#allocation11 + $0x34] sm:$0xf]
    %v1408 = vld [vmem:[#allocation11 + $0x38] sm:$0xff]
    %v1409 = vld [vmem:[#allocation11 + $0x40] sm:$0xff]
    %v1410 = vld [vmem:[#allocation11 + $0x48] sm:$0xff]
    %v1411 = vld [vmem:[#allocation11 + $0x50] sm:$0xf]
    %v1412 = vld [vmem:[#allocation11 + $0x54] sm:$0xff]
    %v1413 = vld [vmem:[#allocation11 + $0x5c] sm:$0xff]
    %v1414 = vld [vmem:[#allocation11 + $0x64] sm:$0xff]
    %v1415 = vld [vmem:[#allocation11 + $0x6c] sm:$0xf]
    %v1416 = vld [vmem:[#allocation11 + $0x70] sm:$0xff]
    %v1417 = vld [vmem:[#allocation11 + $0x78] sm:$0xff]
    %v1418 = vld [vmem:[#allocation11 + $0x80] sm:$0xff]
    %v1419 = vld [vmem:[#allocation11 + $0x88] sm:$0xf]
    %v1420 = vld [vmem:[#allocation11 + $0x8c] sm:$0xff]
    %v1421 = vld [vmem:[#allocation11 + $0x94] sm:$0xff]
    %v1422 = vld [vmem:[#allocation11 + $0x9c] sm:$0xff]
    %v1423 = vld [vmem:[#allocation11 + $0xa4] sm:$0xf]
    %v1424 = vld [vmem:[#allocation11 + $0xa8] sm:$0xff]
    %v1425 = vld [vmem:[#allocation11 + $0xb0] sm:$0xff]
    %v1426 = vld [vmem:[#allocation11 + $0xb8] sm:$0xff]
    %v1427 = vld [vmem:[#allocation11 + $0xc0] sm:$0xf]
    %v1428 = vld [vmem:[#allocation11 + $0xc4] sm:$0xff]
    %v1429 = vld [vmem:[#allocation11 + $0xcc] sm:$0xff]
    %v1430 = vld [vmem:[#allocation11 + $0xd4] sm:$0xff]
    %v1431 = vld [vmem:[#allocation11 + $0xdc] sm:$0xf]
    %v1432 = vld [vmem:[#allocation11 + $0xe0] sm:$0xff]
    %v1433 = vld [vmem:[#allocation11 + $0xe8] sm:$0xff]
    %v1434 = vld [vmem:[#allocation11 + $0xf0] sm:$0xff]
    %v1435 = vld [vmem:[#allocation11 + $0xf8] sm:$0xf]
    %v1436 = vld [vmem:[#allocation11 + $0xfc] sm:$0xff]
    %v1437 = vld [vmem:[#allocation11 + $0x104] sm:$0xff]
    %v1438 = vld [vmem:[#allocation11 + $0x10c] sm:$0xff]
    %v1439 = vld [vmem:[#allocation11 + $0x114] sm:$0xf]
    %v1440 = vld [vmem:[#allocation11 + $0x118] sm:$0xff]
    %v1441 = vld [vmem:[#allocation11 + $0x120] sm:$0xff]
    %v1442 = vld [vmem:[#allocation11 + $0x128] sm:$0xff]
    %v1443 = vld [vmem:[#allocation11 + $0x130] sm:$0xf]
    %v1444 = vld [vmem:[#allocation11 + $0x134] sm:$0xff]
    %v1445 = vld [vmem:[#allocation11 + $0x13c] sm:$0xff]
    %v1446 = vld [vmem:[#allocation11 + $0x144] sm:$0xff]
    %v1447 = vld [vmem:[#allocation11 + $0x14c] sm:$0xf]
    %v1448 = vld [vmem:[#allocation11 + $0x150] sm:$0xff]
    %v1449 = vld [vmem:[#allocation11 + $0x158] sm:$0xff]
    %v1450 = vld [vmem:[#allocation11 + $0x160] sm:$0xff]
    %v1451 = vld [vmem:[#allocation11 + $0x168] sm:$0xf]
    %v1452 = vld [vmem:[#allocation11 + $0x16c] sm:$0xff]
    %v1453 = vld [vmem:[#allocation11 + $0x174] sm:$0xff]
    %v1454 = vld [vmem:[#allocation11 + $0x17c] sm:$0xff]
    %v1455 = vld [vmem:[#allocation11 + $0x184] sm:$0xf]
    %v1456 = vld [vmem:[#allocation11 + $0x188] sm:$0xff]
    %v1457 = vld [vmem:[#allocation11 + $0x190] sm:$0xff]
    %v1458 = vld [vmem:[#allocation11 + $0x198] sm:$0xff]
    %v1459 = vld [vmem:[#allocation11 + $0x1a0] sm:$0xf]
    %v1460 = vld [vmem:[#allocation11 + $0x1a4] sm:$0xff]
    %v1461 = vld [vmem:[#allocation11 + $0x1ac] sm:$0xff]
    %v1462 = vld [vmem:[#allocation11 + $0x1b4] sm:$0xff]
    %v1463 = vld [vmem:[#allocation11 + $0x1bc] sm:$0xf]
    %v1464 = vld [vmem:[#allocation11 + $0x1c0] sm:$0xff]
    %v1465 = vld [vmem:[#allocation11 + $0x1c8] sm:$0xff]
    %v1466 = vld [vmem:[#allocation11 + $0x1d0] sm:$0xff]
    %v1467 = vld [vmem:[#allocation11 + $0x1d8] sm:$0xf]
    %v1468 = vld [vmem:[#allocation11 + $0x1dc] sm:$0xff]
    %v1469 = vld [vmem:[#allocation11 + $0x1e4] sm:$0xff]
    %v1470 = vld [vmem:[#allocation11 + $0x1ec] sm:$0xff]
    %v1471 = vld [vmem:[#allocation11 + $0x1f4] sm:$0xf]
    %v1472 = vld [vmem:[#allocation11 + $0x1f8] sm:$0xff]
    %v1473 = vld [vmem:[#allocation11 + $0x200] sm:$0xff]
    %v1474 = vld [vmem:[#allocation11 + $0x208] sm:$0xff]
    %v1475 = vld [vmem:[#allocation11 + $0x210] sm:$0xf]
    %v1476 = vld [vmem:[#allocation11 + $0x214] sm:$0xff]
    %v1477 = vld [vmem:[#allocation11 + $0x21c] sm:$0xff]
    %v1478 = vld [vmem:[#allocation11 + $0x224] sm:$0xff]
    %v1479 = vld [vmem:[#allocation11 + $0x22c] sm:$0xf]
    %v1480 = vld [vmem:[#allocation11 + $0x230] sm:$0xff]
    %v1481 = vld [vmem:[#allocation11 + $0x238] sm:$0xff]
    %v1482 = vld [vmem:[#allocation11 + $0x240] sm:$0xff]
    %v1483 = vld [vmem:[#allocation11 + $0x248] sm:$0xf]
    %v1484 = vld [vmem:[#allocation11 + $0x24c] sm:$0xff]
    %v1485 = vld [vmem:[#allocation11 + $0x254] sm:$0xff]
    %v1486 = vld [vmem:[#allocation11 + $0x25c] sm:$0xff]
    %v1487 = vld [vmem:[#allocation11 + $0x264] sm:$0xf]
    %v1488 = vld [vmem:[#allocation11 + $0x268] sm:$0xff]
    %v1489 = vld [vmem:[#allocation11 + $0x270] sm:$0xff]
    %v1490 = vld [vmem:[#allocation11 + $0x278] sm:$0xff]
    %v1491 = vld [vmem:[#allocation11 + $0x280] sm:$0xf]
    %v1492 = vld [vmem:[#allocation11 + $0x284] sm:$0xff]
    %v1493 = vld [vmem:[#allocation11 + $0x28c] sm:$0xff]
    %v1494 = vld [vmem:[#allocation11 + $0x294] sm:$0xff]
    %v1495 = vld [vmem:[#allocation11 + $0x29c] sm:$0xf]
    %v1496 = vld [vmem:[#allocation11 + $0x2a0] sm:$0xff]
    %v1497 = vld [vmem:[#allocation11 + $0x2a8] sm:$0xff]
    %v1498 = vld [vmem:[#allocation11 + $0x2b0] sm:$0xff]
    %v1499 = vld [vmem:[#allocation11 + $0x2b8] sm:$0xf]
    %v1500 = vld [vmem:[#allocation11 + $0x2bc] sm:$0xff]
    %v1501 = vld [vmem:[#allocation11 + $0x2c4] sm:$0xff]
    %v1502 = vld [vmem:[#allocation11 + $0x2cc] sm:$0xff]
    %v1503 = vld [vmem:[#allocation11 + $0x2d4] sm:$0xf]
    %v1504 = vld [vmem:[#allocation11 + $0x2d8] sm:$0xff]
    %v1505 = vld [vmem:[#allocation11 + $0x2e0] sm:$0xff]
    %v1506 = vld [vmem:[#allocation11 + $0x2e8] sm:$0xff]
    %v1507 = vld [vmem:[#allocation11 + $0x2f0] sm:$0xf]
    %v1508 = vld [vmem:[#allocation11 + $0x2f4] sm:$0xff]
    %v1509 = vld [vmem:[#allocation11 + $0x2fc] sm:$0xff]
    %v1510 = vld [vmem:[#allocation11 + $0x304] sm:$0xff]
    %v1511 = vld [vmem:[#allocation11 + $0x30c] sm:$0xf]
    %v1512 = vld [vmem:[#allocation11 + $0x310] sm:$0xff]
    %v1513 = vld [vmem:[#allocation11 + $0x318] sm:$0xff]
    %v1514 = vld [vmem:[#allocation11 + $0x320] sm:$0xff]
    %v1515 = vld [vmem:[#allocation11 + $0x328] sm:$0xf]
    %v1516 = vld [vmem:[#allocation11 + $0x32c] sm:$0xff]
    %v1517 = vld [vmem:[#allocation11 + $0x334] sm:$0xff]
    %v1518 = vld [vmem:[#allocation11 + $0x33c] sm:$0xff]
    %v1519 = vld [vmem:[#allocation11 + $0x344] sm:$0xf]
    %v1520 = vld [vmem:[#allocation11 + $0x348] sm:$0xff]
    %v1521 = vld [vmem:[#allocation11 + $0x350] sm:$0xff]
    %v1522 = vld [vmem:[#allocation11 + $0x358] sm:$0xff]
    %v1523 = vld [vmem:[#allocation11 + $0x360] sm:$0xf]
    %v1524 = vld [vmem:[#allocation11 + $0x364] sm:$0xff]
    %v1525 = vld [vmem:[#allocation11 + $0x36c] sm:$0xff]
    %v1526 = vld [vmem:[#allocation11 + $0x374] sm:$0xff]
    %v1527 = vld [vmem:[#allocation11 + $0x37c] sm:$0xf]
    %v1528 = vld [vmem:[#allocation11 + $0x380] sm:$0xff]
    %v1529 = vld [vmem:[#allocation11 + $0x388] sm:$0xff]
    %v1530 = vld [vmem:[#allocation11 + $0x390] sm:$0xff]
    %v1531 = vld [vmem:[#allocation11 + $0x398] sm:$0xf]
    %v1532 = vld [vmem:[#allocation11 + $0x39c] sm:$0xff]
    %v1533 = vld [vmem:[#allocation11 + $0x3a4] sm:$0xff]
    %v1534 = vld [vmem:[#allocation11 + $0x3ac] sm:$0xff]
    %v1535 = vld [vmem:[#allocation11 + $0x3b4] sm:$0xf]
    %v1536 = vld [vmem:[#allocation11 + $0x3b8] sm:$0xff]
    %v1537 = vld [vmem:[#allocation11 + $0x3c0] sm:$0xff]
    %v1538 = vld [vmem:[#allocation11 + $0x3c8] sm:$0xff]
    %v1539 = vld [vmem:[#allocation11 + $0x3d0] sm:$0xf]
    %v1540 = vld [vmem:[#allocation11 + $0x3d4] sm:$0xff]
    %v1541 = vld [vmem:[#allocation11 + $0x3dc] sm:$0xff]
    %v1542 = vld [vmem:[#allocation11 + $0x3e4] sm:$0xff]
    %v1543 = vld [vmem:[#allocation11 + $0x3ec] sm:$0xf]
    %v1544 = vld [vmem:[#allocation11 + $0x3f0] sm:$0xff]
    %v1545 = vld [vmem:[#allocation11 + $0x3f8] sm:$0xff]
    %v1546 = vld [vmem:[#allocation11 + $0x400] sm:$0xff]
    %v1547 = vld [vmem:[#allocation11 + $0x408] sm:$0xf]
    %v1548 = vld [vmem:[#allocation11 + $0x40c] sm:$0xff]
    %v1549 = vld [vmem:[#allocation11 + $0x414] sm:$0xff]
    %v1550 = vld [vmem:[#allocation11 + $0x41c] sm:$0xff]
    %v1551 = vld [vmem:[#allocation11 + $0x424] sm:$0xf]
    %v1552 = vld [vmem:[#allocation11 + $0x428] sm:$0xff]
    %v1553 = vld [vmem:[#allocation11 + $0x430] sm:$0xff]
    %v1554 = vld [vmem:[#allocation11 + $0x438] sm:$0xff]
    %v1555 = vld [vmem:[#allocation11 + $0x440] sm:$0xf]
    %v1556 = vld [vmem:[#allocation11 + $0x444] sm:$0xff]
    %v1557 = vld [vmem:[#allocation11 + $0x44c] sm:$0xff]
    %v1558 = vld [vmem:[#allocation11 + $0x454] sm:$0xff]
    %v1559 = vld [vmem:[#allocation11 + $0x45c] sm:$0xf]
    %v1560 = vld [vmem:[#allocation11 + $0x460] sm:$0xff]
    %v1561 = vld [vmem:[#allocation11 + $0x468] sm:$0xff]
    %v1562 = vld [vmem:[#allocation11 + $0x470] sm:$0xff]
    %v1563 = vld [vmem:[#allocation11 + $0x478] sm:$0xf]
    %v1564 = vld [vmem:[#allocation11 + $0x47c] sm:$0xff]
    %v1565 = vld [vmem:[#allocation11 + $0x484] sm:$0xff]
    %v1566 = vld [vmem:[#allocation11 + $0x48c] sm:$0xff]
    %v1567 = vld [vmem:[#allocation11 + $0x494] sm:$0xf]
    %v1568 = vld [vmem:[#allocation11 + $0x498] sm:$0xff]
    %v1569 = vld [vmem:[#allocation11 + $0x4a0] sm:$0xff]
    %v1570 = vld [vmem:[#allocation11 + $0x4a8] sm:$0xff]
    %v1571 = vld [vmem:[#allocation11 + $0x4b0] sm:$0xf]
    %v1572 = vld [vmem:[#allocation11 + $0x4b4] sm:$0xff]
    %v1573 = vld [vmem:[#allocation11 + $0x4bc] sm:$0xff]
    %v1574 = vld [vmem:[#allocation11 + $0x4c4] sm:$0xff]
    %v1575 = vld [vmem:[#allocation11 + $0x4cc] sm:$0xf]
    %v1576 = vld [vmem:[#allocation11 + $0x4d0] sm:$0xff]
    %v1577 = vld [vmem:[#allocation11 + $0x4d8] sm:$0xff]
    %v1578 = vld [vmem:[#allocation11 + $0x4e0] sm:$0xff]
    %v1579 = vld [vmem:[#allocation11 + $0x4e8] sm:$0xf]
    %v1580 = vld [vmem:[#allocation11 + $0x4ec] sm:$0xff]
    %v1581 = vld [vmem:[#allocation11 + $0x4f4] sm:$0xff]
    %v1582 = vld [vmem:[#allocation11 + $0x4fc] sm:$0xff]
    %v1583 = vld [vmem:[#allocation11 + $0x504] sm:$0xf]
    %v1584 = vld [vmem:[#allocation11 + $0x508] sm:$0xff]
    %v1585 = vld [vmem:[#allocation11 + $0x510] sm:$0xff]
    %v1586 = vld [vmem:[#allocation11 + $0x518] sm:$0xff]
    %v1587 = vld [vmem:[#allocation11 + $0x520] sm:$0xf]
    %v1588 = vld [vmem:[#allocation11 + $0x524] sm:$0xff]
    %v1589 = vld [vmem:[#allocation11 + $0x52c] sm:$0xff]
    %v1590 = vld [vmem:[#allocation11 + $0x534] sm:$0xff]
    %v1591 = vld [vmem:[#allocation11 + $0x53c] sm:$0xf]
    %v1592 = vld [vmem:[#allocation11 + $0x540] sm:$0xff]
    %v1593 = vld [vmem:[#allocation11 + $0x548] sm:$0xff]
    %v1594 = vld [vmem:[#allocation11 + $0x550] sm:$0xff]
    %v1595 = vld [vmem:[#allocation11 + $0x558] sm:$0xf]
    %v1596 = vld [vmem:[#allocation11 + $0x55c] sm:$0xff]
    %v1597 = vld [vmem:[#allocation11 + $0x564] sm:$0xff]
    %v1598 = vld [vmem:[#allocation11 + $0x56c] sm:$0xff]
    %v1599 = vld [vmem:[#allocation11 + $0x574] sm:$0xf]
    %v1600 = vld [vmem:[#allocation11 + $0x578] sm:$0xff]
    %v1601 = vld [vmem:[#allocation11 + $0x580] sm:$0xff]
    %v1602 = vld [vmem:[#allocation11 + $0x588] sm:$0xff]
    %v1603 = vld [vmem:[#allocation11 + $0x590] sm:$0xf]
    %v1604 = vld [vmem:[#allocation11 + $0x594] sm:$0xff]
    %v1605 = vld [vmem:[#allocation11 + $0x59c] sm:$0xff]
    %v1606 = vld [vmem:[#allocation11 + $0x5a4] sm:$0xff]
    %v1607 = vld [vmem:[#allocation11 + $0x5ac] sm:$0xf]
    %v1608 = vld [vmem:[#allocation11 + $0x5b0] sm:$0xff]
    %v1609 = vld [vmem:[#allocation11 + $0x5b8] sm:$0xff]
    %v1610 = vld [vmem:[#allocation11 + $0x5c0] sm:$0xff]
    %v1611 = vld [vmem:[#allocation11 + $0x5c8] sm:$0xf]
    %v1612 = vld [vmem:[#allocation11 + $0x5cc] sm:$0xff]
    %v1613 = vld [vmem:[#allocation11 + $0x5d4] sm:$0xff]
    %v1614 = vld [vmem:[#allocation11 + $0x5dc] sm:$0xff]
    %v1615 = vld [vmem:[#allocation11 + $0x5e4] sm:$0xf]
    %v1616 = vld [vmem:[#allocation11 + $0x5e8] sm:$0xff]
    %v1617 = vld [vmem:[#allocation11 + $0x5f0] sm:$0xff]
    %v1618 = vld [vmem:[#allocation11 + $0x5f8] sm:$0xff]
    %v1619 = vld [vmem:[#allocation11 + $0x600] sm:$0xf]
    %v1620 = vld [vmem:[#allocation11 + $0x604] sm:$0xff]
    %v1621 = vld [vmem:[#allocation11 + $0x60c] sm:$0xff]
    %v1622 = vld [vmem:[#allocation11 + $0x614] sm:$0xff]
    %v1623 = vld [vmem:[#allocation11 + $0x61c] sm:$0xf]
    %v1624 = vld [vmem:[#allocation11 + $0x620] sm:$0xff]
    %v1625 = vld [vmem:[#allocation11 + $0x628] sm:$0xff]
    %v1626 = vld [vmem:[#allocation11 + $0x630] sm:$0xff]
    %v1627 = vld [vmem:[#allocation11 + $0x638] sm:$0xf]
    %v1628 = vld [vmem:[#allocation11 + $0x63c] sm:$0xff]
    %v1629 = vld [vmem:[#allocation11 + $0x644] sm:$0xff]
    %v1630 = vld [vmem:[#allocation11 + $0x64c] sm:$0xff]
    %v1631 = vld [vmem:[#allocation11 + $0x654] sm:$0xf]
    %v1632 = vld [vmem:[#allocation11 + $0x658] sm:$0xff]
    %v1633 = vld [vmem:[#allocation11 + $0x660] sm:$0xff]
    %v1634 = vld [vmem:[#allocation11 + $0x668] sm:$0xff]
    %v1635 = vld [vmem:[#allocation11 + $0x670] sm:$0xf]
    %v1636 = vld [vmem:[#allocation11 + $0x674] sm:$0xff]
    %v1637 = vld [vmem:[#allocation11 + $0x67c] sm:$0xff]
    %v1638 = vld [vmem:[#allocation11 + $0x684] sm:$0xff]
    %v1639 = vld [vmem:[#allocation11 + $0x68c] sm:$0xf]
    %v1640 = vld [vmem:[#allocation11 + $0x690] sm:$0xff]
    %v1641 = vld [vmem:[#allocation11 + $0x698] sm:$0xff]
    %v1642 = vld [vmem:[#allocation11 + $0x6a0] sm:$0xff]
    %v1643 = vld [vmem:[#allocation11 + $0x6a8] sm:$0xf]
    %v1644 = vld [vmem:[#allocation11 + $0x6ac] sm:$0xff]
    %v1645 = vld [vmem:[#allocation11 + $0x6b4] sm:$0xff]
    %v1646 = vld [vmem:[#allocation11 + $0x6bc] sm:$0xff]
    %v1647 = vld [vmem:[#allocation11 + $0x6c4] sm:$0xf]
    %v1648 = vld [vmem:[#allocation11 + $0x6c8] sm:$0xff]
    %v1649 = vld [vmem:[#allocation11 + $0x6d0] sm:$0xff]
    %v1650 = vld [vmem:[#allocation11 + $0x6d8] sm:$0xff]
    %v1651 = vld [vmem:[#allocation11 + $0x6e0] sm:$0xf]
    %v1652 = vld [vmem:[#allocation11 + $0x6e4] sm:$0xff]
    %v1653 = vld [vmem:[#allocation11 + $0x6ec] sm:$0xff]
    %v1654 = vld [vmem:[#allocation11 + $0x6f4] sm:$0xff]
    %v1655 = vld [vmem:[#allocation11 + $0x6fc] sm:$0xf]
    %v1656 = vld [vmem:[%s6] sm:$0xff]
    %v1658 = vlaneseq
    %v1659 = vshrl.u32 %v1658, 7
    %v1660 = vsub.s32 0, %v1659
    %v1661 = vrot.slane %v1656, %v1660
    %v1662 = vlaneseq
    %v1663 = vshrl.u32 %v1662, 7
    %v1664 = vsub.s32 1, %v1663
    %v1665 = vrot.slane %v1656, %v1664
    %v1666 = vlaneseq
    %v1667 = vshrl.u32 %v1666, 7
    %v1668 = vsub.s32 2, %v1667
    %v1669 = vrot.slane %v1656, %v1668
    %v1670 = vlaneseq
    %v1671 = vshrl.u32 %v1670, 7
    %v1672 = vsub.s32 3, %v1671
    %v1673 = vrot.slane %v1656, %v1672
    %v1674 = vlaneseq
    %v1675 = vshrl.u32 %v1674, 7
    %v1676 = vsub.s32 4, %v1675
    %v1677 = vrot.slane %v1656, %v1676
    %v1678 = vlaneseq
    %v1679 = vshrl.u32 %v1678, 7
    %v1680 = vsub.s32 5, %v1679
    %v1681 = vrot.slane %v1656, %v1680
    %v1682 = vlaneseq
    %v1683 = vshrl.u32 %v1682, 7
    %v1684 = vsub.s32 6, %v1683
    %v1685 = vrot.slane %v1656, %v1684
    %v1949 = vunpack.c.l.b16 %v1400
    %v1950 = vunpack.c.h.b16 %v1400
    %v1951 = vunpack.c.l.b16 %v1401
    %v1952 = vunpack.c.h.b16 %v1401
    %v1953 = vunpack.c.l.b16 %v1402
    %v1954 = vunpack.c.h.b16 %v1402
    %v1955 = vunpack.c.l.b16 %v1403
    %v1956 = vunpack.c.l.b16 %v1404
    %v1957 = vunpack.c.h.b16 %v1404
    %v1958 = vunpack.c.l.b16 %v1405
    %v1959 = vunpack.c.h.b16 %v1405
    %v1960 = vunpack.c.l.b16 %v1406
    %v1961 = vunpack.c.h.b16 %v1406
    %v1962 = vunpack.c.l.b16 %v1407
    %v1963 = vunpack.c.l.b16 %v1408
    %v1964 = vunpack.c.h.b16 %v1408
    %v1965 = vunpack.c.l.b16 %v1409
    %v1966 = vunpack.c.h.b16 %v1409
    %v1967 = vunpack.c.l.b16 %v1410
    %v1968 = vunpack.c.h.b16 %v1410
    %v1969 = vunpack.c.l.b16 %v1411
    %v1970 = vunpack.c.l.b16 %v1412
    %v1971 = vunpack.c.h.b16 %v1412
    %v1972 = vunpack.c.l.b16 %v1413
    %v1973 = vunpack.c.h.b16 %v1413
    %v1974 = vunpack.c.l.b16 %v1414
    %v1975 = vunpack.c.h.b16 %v1414
    %v1976 = vunpack.c.l.b16 %v1415
    %v1977 = vunpack.c.l.b16 %v1416
    %v1978 = vunpack.c.h.b16 %v1416
    %v1979 = vunpack.c.l.b16 %v1417
    %v1980 = vunpack.c.h.b16 %v1417
    %v1981 = vunpack.c.l.b16 %v1418
    %v1982 = vunpack.c.h.b16 %v1418
    %v1983 = vunpack.c.l.b16 %v1419
    %v1984 = vunpack.c.l.b16 %v1420
    %v1985 = vunpack.c.h.b16 %v1420
    %v1986 = vunpack.c.l.b16 %v1421
    %v1987 = vunpack.c.h.b16 %v1421
    %v1988 = vunpack.c.l.b16 %v1422
    %v1989 = vunpack.c.h.b16 %v1422
    %v1990 = vunpack.c.l.b16 %v1423
    %v1991 = vunpack.c.l.b16 %v1424
    %v1992 = vunpack.c.h.b16 %v1424
    %v1993 = vunpack.c.l.b16 %v1425
    %v1994 = vunpack.c.h.b16 %v1425
    %v1995 = vunpack.c.l.b16 %v1426
    %v1996 = vunpack.c.h.b16 %v1426
    %v1997 = vunpack.c.l.b16 %v1427
    %v1998 = vunpack.c.l.b16 %v1428
    %v1999 = vunpack.c.h.b16 %v1428
    %v2000 = vunpack.c.l.b16 %v1429
    %v2001 = vunpack.c.h.b16 %v1429
    %v2002 = vunpack.c.l.b16 %v1430
    %v2003 = vunpack.c.h.b16 %v1430
    %v2004 = vunpack.c.l.b16 %v1431
    %v2005 = vunpack.c.l.b16 %v1432
    %v2006 = vunpack.c.h.b16 %v1432
    %v2007 = vunpack.c.l.b16 %v1433
    %v2008 = vunpack.c.h.b16 %v1433
    %v2009 = vunpack.c.l.b16 %v1434
    %v2010 = vunpack.c.h.b16 %v1434
    %v2011 = vunpack.c.l.b16 %v1435
    %v2012 = vunpack.c.l.b16 %v1436
    %v2013 = vunpack.c.h.b16 %v1436
    %v2014 = vunpack.c.l.b16 %v1437
    %v2015 = vunpack.c.h.b16 %v1437
    %v2016 = vunpack.c.l.b16 %v1438
    %v2017 = vunpack.c.h.b16 %v1438
    %v2018 = vunpack.c.l.b16 %v1439
    %v2019 = vunpack.c.l.b16 %v1440
    %v2020 = vunpack.c.h.b16 %v1440
    %v2021 = vunpack.c.l.b16 %v1441
    %v2022 = vunpack.c.h.b16 %v1441
    %v2023 = vunpack.c.l.b16 %v1442
    %v2024 = vunpack.c.h.b16 %v1442
    %v2025 = vunpack.c.l.b16 %v1443
    %v2026 = vunpack.c.l.b16 %v1444
    %v2027 = vunpack.c.h.b16 %v1444
    %v2028 = vunpack.c.l.b16 %v1445
    %v2029 = vunpack.c.h.b16 %v1445
    %v2030 = vunpack.c.l.b16 %v1446
    %v2031 = vunpack.c.h.b16 %v1446
    %v2032 = vunpack.c.l.b16 %v1447
    %v2033 = vunpack.c.l.b16 %v1448
    %v2034 = vunpack.c.h.b16 %v1448
    %v2035 = vunpack.c.l.b16 %v1449
    %v2036 = vunpack.c.h.b16 %v1449
    %v2037 = vunpack.c.l.b16 %v1450
    %v2038 = vunpack.c.h.b16 %v1450
    %v2039 = vunpack.c.l.b16 %v1451
    %v2040 = vunpack.c.l.b16 %v1452
    %v2041 = vunpack.c.h.b16 %v1452
    %v2042 = vunpack.c.l.b16 %v1453
    %v2043 = vunpack.c.h.b16 %v1453
    %v2044 = vunpack.c.l.b16 %v1454
    %v2045 = vunpack.c.h.b16 %v1454
    %v2046 = vunpack.c.l.b16 %v1455
    %v2047 = vunpack.c.l.b16 %v1456
    %v2048 = vunpack.c.h.b16 %v1456
    %v2049 = vunpack.c.l.b16 %v1457
    %v2050 = vunpack.c.h.b16 %v1457
    %v2051 = vunpack.c.l.b16 %v1458
    %v2052 = vunpack.c.h.b16 %v1458
    %v2053 = vunpack.c.l.b16 %v1459
    %v2054 = vunpack.c.l.b16 %v1460
    %v2055 = vunpack.c.h.b16 %v1460
    %v2056 = vunpack.c.l.b16 %v1461
    %v2057 = vunpack.c.h.b16 %v1461
    %v2058 = vunpack.c.l.b16 %v1462
    %v2059 = vunpack.c.h.b16 %v1462
    %v2060 = vunpack.c.l.b16 %v1463
    %v2061 = vunpack.c.l.b16 %v1464
    %v2062 = vunpack.c.h.b16 %v1464
    %v2063 = vunpack.c.l.b16 %v1465
    %v2064 = vunpack.c.h.b16 %v1465
    %v2065 = vunpack.c.l.b16 %v1466
    %v2066 = vunpack.c.h.b16 %v1466
    %v2067 = vunpack.c.l.b16 %v1467
    %v2068 = vunpack.c.l.b16 %v1468
    %v2069 = vunpack.c.h.b16 %v1468
    %v2070 = vunpack.c.l.b16 %v1469
    %v2071 = vunpack.c.h.b16 %v1469
    %v2072 = vunpack.c.l.b16 %v1470
    %v2073 = vunpack.c.h.b16 %v1470
    %v2074 = vunpack.c.l.b16 %v1471
    %v2075 = vunpack.c.l.b16 %v1472
    %v2076 = vunpack.c.h.b16 %v1472
    %v2077 = vunpack.c.l.b16 %v1473
    %v2078 = vunpack.c.h.b16 %v1473
    %v2079 = vunpack.c.l.b16 %v1474
    %v2080 = vunpack.c.h.b16 %v1474
    %v2081 = vunpack.c.l.b16 %v1475
    %v2082 = vunpack.c.l.b16 %v1476
    %v2083 = vunpack.c.h.b16 %v1476
    %v2084 = vunpack.c.l.b16 %v1477
    %v2085 = vunpack.c.h.b16 %v1477
    %v2086 = vunpack.c.l.b16 %v1478
    %v2087 = vunpack.c.h.b16 %v1478
    %v2088 = vunpack.c.l.b16 %v1479
    %v2089 = vunpack.c.l.b16 %v1480
    %v2090 = vunpack.c.h.b16 %v1480
    %v2091 = vunpack.c.l.b16 %v1481
    %v2092 = vunpack.c.h.b16 %v1481
    %v2093 = vunpack.c.l.b16 %v1482
    %v2094 = vunpack.c.h.b16 %v1482
    %v2095 = vunpack.c.l.b16 %v1483
    %v2096 = vunpack.c.l.b16 %v1484
    %v2097 = vunpack.c.h.b16 %v1484
    %v2098 = vunpack.c.l.b16 %v1485
    %v2099 = vunpack.c.h.b16 %v1485
    %v2100 = vunpack.c.l.b16 %v1486
    %v2101 = vunpack.c.h.b16 %v1486
    %v2102 = vunpack.c.l.b16 %v1487
    %v2103 = vunpack.c.l.b16 %v1488
    %v2104 = vunpack.c.h.b16 %v1488
    %v2105 = vunpack.c.l.b16 %v1489
    %v2106 = vunpack.c.h.b16 %v1489
    %v2107 = vunpack.c.l.b16 %v1490
    %v2108 = vunpack.c.h.b16 %v1490
    %v2109 = vunpack.c.l.b16 %v1491
    %v2110 = vunpack.c.l.b16 %v1492
    %v2111 = vunpack.c.h.b16 %v1492
    %v2112 = vunpack.c.l.b16 %v1493
    %v2113 = vunpack.c.h.b16 %v1493
    %v2114 = vunpack.c.l.b16 %v1494
    %v2115 = vunpack.c.h.b16 %v1494
    %v2116 = vunpack.c.l.b16 %v1495
    %v2117 = vunpack.c.l.b16 %v1496
    %v2118 = vunpack.c.h.b16 %v1496
    %v2119 = vunpack.c.l.b16 %v1497
    %v2120 = vunpack.c.h.b16 %v1497
    %v2121 = vunpack.c.l.b16 %v1498
    %v2122 = vunpack.c.h.b16 %v1498
    %v2123 = vunpack.c.l.b16 %v1499
    %v2124 = vunpack.c.l.b16 %v1500
    %v2125 = vunpack.c.h.b16 %v1500
    %v2126 = vunpack.c.l.b16 %v1501
    %v2127 = vunpack.c.h.b16 %v1501
    %v2128 = vunpack.c.l.b16 %v1502
    %v2129 = vunpack.c.h.b16 %v1502
    %v2130 = vunpack.c.l.b16 %v1503
    %v2131 = vunpack.c.l.b16 %v1504
    %v2132 = vunpack.c.h.b16 %v1504
    %v2133 = vunpack.c.l.b16 %v1505
    %v2134 = vunpack.c.h.b16 %v1505
    %v2135 = vunpack.c.l.b16 %v1506
    %v2136 = vunpack.c.h.b16 %v1506
    %v2137 = vunpack.c.l.b16 %v1507
    %v2138 = vunpack.c.l.b16 %v1508
    %v2139 = vunpack.c.h.b16 %v1508
    %v2140 = vunpack.c.l.b16 %v1509
    %v2141 = vunpack.c.h.b16 %v1509
    %v2142 = vunpack.c.l.b16 %v1510
    %v2143 = vunpack.c.h.b16 %v1510
    %v2144 = vunpack.c.l.b16 %v1511
    %v2145 = vunpack.c.l.b16 %v1512
    %v2146 = vunpack.c.h.b16 %v1512
    %v2147 = vunpack.c.l.b16 %v1513
    %v2148 = vunpack.c.h.b16 %v1513
    %v2149 = vunpack.c.l.b16 %v1514
    %v2150 = vunpack.c.h.b16 %v1514
    %v2151 = vunpack.c.l.b16 %v1515
    %v2152 = vunpack.c.l.b16 %v1516
    %v2153 = vunpack.c.h.b16 %v1516
    %v2154 = vunpack.c.l.b16 %v1517
    %v2155 = vunpack.c.h.b16 %v1517
    %v2156 = vunpack.c.l.b16 %v1518
    %v2157 = vunpack.c.h.b16 %v1518
    %v2158 = vunpack.c.l.b16 %v1519
    %v2159 = vunpack.c.l.b16 %v1520
    %v2160 = vunpack.c.h.b16 %v1520
    %v2161 = vunpack.c.l.b16 %v1521
    %v2162 = vunpack.c.h.b16 %v1521
    %v2163 = vunpack.c.l.b16 %v1522
    %v2164 = vunpack.c.h.b16 %v1522
    %v2165 = vunpack.c.l.b16 %v1523
    %v2166 = vunpack.c.l.b16 %v1524
    %v2167 = vunpack.c.h.b16 %v1524
    %v2168 = vunpack.c.l.b16 %v1525
    %v2169 = vunpack.c.h.b16 %v1525
    %v2170 = vunpack.c.l.b16 %v1526
    %v2171 = vunpack.c.h.b16 %v1526
    %v2172 = vunpack.c.l.b16 %v1527
    %v2173 = vunpack.c.l.b16 %v1528
    %v2174 = vunpack.c.h.b16 %v1528
    %v2175 = vunpack.c.l.b16 %v1529
    %v2176 = vunpack.c.h.b16 %v1529
    %v2177 = vunpack.c.l.b16 %v1530
    %v2178 = vunpack.c.h.b16 %v1530
    %v2179 = vunpack.c.l.b16 %v1531
    %v2180 = vunpack.c.l.b16 %v1532
    %v2181 = vunpack.c.h.b16 %v1532
    %v2182 = vunpack.c.l.b16 %v1533
    %v2183 = vunpack.c.h.b16 %v1533
    %v2184 = vunpack.c.l.b16 %v1534
    %v2185 = vunpack.c.h.b16 %v1534
    %v2186 = vunpack.c.l.b16 %v1535
    %v2187 = vunpack.c.l.b16 %v1536
    %v2188 = vunpack.c.h.b16 %v1536
    %v2189 = vunpack.c.l.b16 %v1537
    %v2190 = vunpack.c.h.b16 %v1537
    %v2191 = vunpack.c.l.b16 %v1538
    %v2192 = vunpack.c.h.b16 %v1538
    %v2193 = vunpack.c.l.b16 %v1539
    %v2194 = vunpack.c.l.b16 %v1540
    %v2195 = vunpack.c.h.b16 %v1540
    %v2196 = vunpack.c.l.b16 %v1541
    %v2197 = vunpack.c.h.b16 %v1541
    %v2198 = vunpack.c.l.b16 %v1542
    %v2199 = vunpack.c.h.b16 %v1542
    %v2200 = vunpack.c.l.b16 %v1543
    %v2201 = vunpack.c.l.b16 %v1544
    %v2202 = vunpack.c.h.b16 %v1544
    %v2203 = vunpack.c.l.b16 %v1545
    %v2204 = vunpack.c.h.b16 %v1545
    %v2205 = vunpack.c.l.b16 %v1546
    %v2206 = vunpack.c.h.b16 %v1546
    %v2207 = vunpack.c.l.b16 %v1547
    %v2208 = vunpack.c.l.b16 %v1548
    %v2209 = vunpack.c.h.b16 %v1548
    %v2210 = vunpack.c.l.b16 %v1549
    %v2211 = vunpack.c.h.b16 %v1549
    %v2212 = vunpack.c.l.b16 %v1550
    %v2213 = vunpack.c.h.b16 %v1550
    %v2214 = vunpack.c.l.b16 %v1551
    %v2215 = vunpack.c.l.b16 %v1552
    %v2216 = vunpack.c.h.b16 %v1552
    %v2217 = vunpack.c.l.b16 %v1553
    %v2218 = vunpack.c.h.b16 %v1553
    %v2219 = vunpack.c.l.b16 %v1554
    %v2220 = vunpack.c.h.b16 %v1554
    %v2221 = vunpack.c.l.b16 %v1555
    %v2222 = vunpack.c.l.b16 %v1556
    %v2223 = vunpack.c.h.b16 %v1556
    %v2224 = vunpack.c.l.b16 %v1557
    %v2225 = vunpack.c.h.b16 %v1557
    %v2226 = vunpack.c.l.b16 %v1558
    %v2227 = vunpack.c.h.b16 %v1558
    %v2228 = vunpack.c.l.b16 %v1559
    %v2229 = vunpack.c.l.b16 %v1560
    %v2230 = vunpack.c.h.b16 %v1560
    %v2231 = vunpack.c.l.b16 %v1561
    %v2232 = vunpack.c.h.b16 %v1561
    %v2233 = vunpack.c.l.b16 %v1562
    %v2234 = vunpack.c.h.b16 %v1562
    %v2235 = vunpack.c.l.b16 %v1563
    %v2236 = vunpack.c.l.b16 %v1564
    %v2237 = vunpack.c.h.b16 %v1564
    %v2238 = vunpack.c.l.b16 %v1565
    %v2239 = vunpack.c.h.b16 %v1565
    %v2240 = vunpack.c.l.b16 %v1566
    %v2241 = vunpack.c.h.b16 %v1566
    %v2242 = vunpack.c.l.b16 %v1567
    %v2243 = vunpack.c.l.b16 %v1568
    %v2244 = vunpack.c.h.b16 %v1568
    %v2245 = vunpack.c.l.b16 %v1569
    %v2246 = vunpack.c.h.b16 %v1569
    %v2247 = vunpack.c.l.b16 %v1570
    %v2248 = vunpack.c.h.b16 %v1570
    %v2249 = vunpack.c.l.b16 %v1571
    %v2250 = vunpack.c.l.b16 %v1572
    %v2251 = vunpack.c.h.b16 %v1572
    %v2252 = vunpack.c.l.b16 %v1573
    %v2253 = vunpack.c.h.b16 %v1573
    %v2254 = vunpack.c.l.b16 %v1574
    %v2255 = vunpack.c.h.b16 %v1574
    %v2256 = vunpack.c.l.b16 %v1575
    %v2257 = vunpack.c.l.b16 %v1576
    %v2258 = vunpack.c.h.b16 %v1576
    %v2259 = vunpack.c.l.b16 %v1577
    %v2260 = vunpack.c.h.b16 %v1577
    %v2261 = vunpack.c.l.b16 %v1578
    %v2262 = vunpack.c.h.b16 %v1578
    %v2263 = vunpack.c.l.b16 %v1579
    %v2264 = vunpack.c.l.b16 %v1580
    %v2265 = vunpack.c.h.b16 %v1580
    %v2266 = vunpack.c.l.b16 %v1581
    %v2267 = vunpack.c.h.b16 %v1581
    %v2268 = vunpack.c.l.b16 %v1582
    %v2269 = vunpack.c.h.b16 %v1582
    %v2270 = vunpack.c.l.b16 %v1583
    %v2271 = vunpack.c.l.b16 %v1584
    %v2272 = vunpack.c.h.b16 %v1584
    %v2273 = vunpack.c.l.b16 %v1585
    %v2274 = vunpack.c.h.b16 %v1585
    %v2275 = vunpack.c.l.b16 %v1586
    %v2276 = vunpack.c.h.b16 %v1586
    %v2277 = vunpack.c.l.b16 %v1587
    %v2278 = vunpack.c.l.b16 %v1588
    %v2279 = vunpack.c.h.b16 %v1588
    %v2280 = vunpack.c.l.b16 %v1589
    %v2281 = vunpack.c.h.b16 %v1589
    %v2282 = vunpack.c.l.b16 %v1590
    %v2283 = vunpack.c.h.b16 %v1590
    %v2284 = vunpack.c.l.b16 %v1591
    %v2285 = vunpack.c.l.b16 %v1592
    %v2286 = vunpack.c.h.b16 %v1592
    %v2287 = vunpack.c.l.b16 %v1593
    %v2288 = vunpack.c.h.b16 %v1593
    %v2289 = vunpack.c.l.b16 %v1594
    %v2290 = vunpack.c.h.b16 %v1594
    %v2291 = vunpack.c.l.b16 %v1595
    %v2292 = vunpack.c.l.b16 %v1596
    %v2293 = vunpack.c.h.b16 %v1596
    %v2294 = vunpack.c.l.b16 %v1597
    %v2295 = vunpack.c.h.b16 %v1597
    %v2296 = vunpack.c.l.b16 %v1598
    %v2297 = vunpack.c.h.b16 %v1598
    %v2298 = vunpack.c.l.b16 %v1599
    %v2299 = vunpack.c.l.b16 %v1600
    %v2300 = vunpack.c.h.b16 %v1600
    %v2301 = vunpack.c.l.b16 %v1601
    %v2302 = vunpack.c.h.b16 %v1601
    %v2303 = vunpack.c.l.b16 %v1602
    %v2304 = vunpack.c.h.b16 %v1602
    %v2305 = vunpack.c.l.b16 %v1603
    %v2306 = vunpack.c.l.b16 %v1604
    %v2307 = vunpack.c.h.b16 %v1604
    %v2308 = vunpack.c.l.b16 %v1605
    %v2309 = vunpack.c.h.b16 %v1605
    %v2310 = vunpack.c.l.b16 %v1606
    %v2311 = vunpack.c.h.b16 %v1606
    %v2312 = vunpack.c.l.b16 %v1607
    %v2313 = vunpack.c.l.b16 %v1608
    %v2314 = vunpack.c.h.b16 %v1608
    %v2315 = vunpack.c.l.b16 %v1609
    %v2316 = vunpack.c.h.b16 %v1609
    %v2317 = vunpack.c.l.b16 %v1610
    %v2318 = vunpack.c.h.b16 %v1610
    %v2319 = vunpack.c.l.b16 %v1611
    %v2320 = vunpack.c.l.b16 %v1612
    %v2321 = vunpack.c.h.b16 %v1612
    %v2322 = vunpack.c.l.b16 %v1613
    %v2323 = vunpack.c.h.b16 %v1613
    %v2324 = vunpack.c.l.b16 %v1614
    %v2325 = vunpack.c.h.b16 %v1614
    %v2326 = vunpack.c.l.b16 %v1615
    %v2327 = vunpack.c.l.b16 %v1616
    %v2328 = vunpack.c.h.b16 %v1616
    %v2329 = vunpack.c.l.b16 %v1617
    %v2330 = vunpack.c.h.b16 %v1617
    %v2331 = vunpack.c.l.b16 %v1618
    %v2332 = vunpack.c.h.b16 %v1618
    %v2333 = vunpack.c.l.b16 %v1619
    %v2334 = vunpack.c.l.b16 %v1620
    %v2335 = vunpack.c.h.b16 %v1620
    %v2336 = vunpack.c.l.b16 %v1621
    %v2337 = vunpack.c.h.b16 %v1621
    %v2338 = vunpack.c.l.b16 %v1622
    %v2339 = vunpack.c.h.b16 %v1622
    %v2340 = vunpack.c.l.b16 %v1623
    %v2341 = vunpack.c.l.b16 %v1624
    %v2342 = vunpack.c.h.b16 %v1624
    %v2343 = vunpack.c.l.b16 %v1625
    %v2344 = vunpack.c.h.b16 %v1625
    %v2345 = vunpack.c.l.b16 %v1626
    %v2346 = vunpack.c.h.b16 %v1626
    %v2347 = vunpack.c.l.b16 %v1627
    %v2348 = vunpack.c.l.b16 %v1628
    %v2349 = vunpack.c.h.b16 %v1628
    %v2350 = vunpack.c.l.b16 %v1629
    %v2351 = vunpack.c.h.b16 %v1629
    %v2352 = vunpack.c.l.b16 %v1630
    %v2353 = vunpack.c.h.b16 %v1630
    %v2354 = vunpack.c.l.b16 %v1631
    %v2355 = vunpack.c.l.b16 %v1632
    %v2356 = vunpack.c.h.b16 %v1632
    %v2357 = vunpack.c.l.b16 %v1633
    %v2358 = vunpack.c.h.b16 %v1633
    %v2359 = vunpack.c.l.b16 %v1634
    %v2360 = vunpack.c.h.b16 %v1634
    %v2361 = vunpack.c.l.b16 %v1635
    %v2362 = vunpack.c.l.b16 %v1636
    %v2363 = vunpack.c.h.b16 %v1636
    %v2364 = vunpack.c.l.b16 %v1637
    %v2365 = vunpack.c.h.b16 %v1637
    %v2366 = vunpack.c.l.b16 %v1638
    %v2367 = vunpack.c.h.b16 %v1638
    %v2368 = vunpack.c.l.b16 %v1639
    %v2369 = vunpack.c.l.b16 %v1640
    %v2370 = vunpack.c.h.b16 %v1640
    %v2371 = vunpack.c.l.b16 %v1641
    %v2372 = vunpack.c.h.b16 %v1641
    %v2373 = vunpack.c.l.b16 %v1642
    %v2374 = vunpack.c.h.b16 %v1642
    %v2375 = vunpack.c.l.b16 %v1643
    %v2376 = vunpack.c.l.b16 %v1644
    %v2377 = vunpack.c.h.b16 %v1644
    %v2378 = vunpack.c.l.b16 %v1645
    %v2379 = vunpack.c.h.b16 %v1645
    %v2380 = vunpack.c.l.b16 %v1646
    %v2381 = vunpack.c.h.b16 %v1646
    %v2382 = vunpack.c.l.b16 %v1647
    %v2383 = vunpack.c.l.b16 %v1648
    %v2384 = vunpack.c.h.b16 %v1648
    %v2385 = vunpack.c.l.b16 %v1649
    %v2386 = vunpack.c.h.b16 %v1649
    %v2387 = vunpack.c.l.b16 %v1650
    %v2388 = vunpack.c.h.b16 %v1650
    %v2389 = vunpack.c.l.b16 %v1651
    %v2390 = vunpack.c.l.b16 %v1652
    %v2391 = vunpack.c.h.b16 %v1652
    %v2392 = vunpack.c.l.b16 %v1653
    %v2393 = vunpack.c.h.b16 %v1653
    %v2394 = vunpack.c.l.b16 %v1654
    %v2395 = vunpack.c.h.b16 %v1654
    %v2396 = vunpack.c.l.b16 %v1655
    %v2397 = vpack.c.b16 %v1956, %v1949
    %v2398 = vpack.c.b16 %v1957, %v1950
    %v2399 = vpack.c.b16 %v1958, %v1951
    %v2400 = vpack.c.b16 %v1959, %v1952
    %v2401 = vpack.c.b16 %v1960, %v1953
    %v2402 = vpack.c.b16 %v1961, %v1954
    %v2403 = vpack.c.b16 %v1962, %v1955
    %v2404 = vpack.c.b16 %v1970, %v1963
    %v2405 = vpack.c.b16 %v1971, %v1964
    %v2406 = vpack.c.b16 %v1972, %v1965
    %v2407 = vpack.c.b16 %v1973, %v1966
    %v2408 = vpack.c.b16 %v1974, %v1967
    %v2409 = vpack.c.b16 %v1975, %v1968
    %v2410 = vpack.c.b16 %v1976, %v1969
    %v2411 = vpack.c.b16 %v1984, %v1977
    %v2412 = vpack.c.b16 %v1985, %v1978
    %v2413 = vpack.c.b16 %v1986, %v1979
    %v2414 = vpack.c.b16 %v1987, %v1980
    %v2415 = vpack.c.b16 %v1988, %v1981
    %v2416 = vpack.c.b16 %v1989, %v1982
    %v2417 = vpack.c.b16 %v1990, %v1983
    %v2418 = vpack.c.b16 %v1998, %v1991
    %v2419 = vpack.c.b16 %v1999, %v1992
    %v2420 = vpack.c.b16 %v2000, %v1993
    %v2421 = vpack.c.b16 %v2001, %v1994
    %v2422 = vpack.c.b16 %v2002, %v1995
    %v2423 = vpack.c.b16 %v2003, %v1996
    %v2424 = vpack.c.b16 %v2004, %v1997
    %v2425 = vpack.c.b16 %v2012, %v2005
    %v2426 = vpack.c.b16 %v2013, %v2006
    %v2427 = vpack.c.b16 %v2014, %v2007
    %v2428 = vpack.c.b16 %v2015, %v2008
    %v2429 = vpack.c.b16 %v2016, %v2009
    %v2430 = vpack.c.b16 %v2017, %v2010
    %v2431 = vpack.c.b16 %v2018, %v2011
    %v2432 = vpack.c.b16 %v2026, %v2019
    %v2433 = vpack.c.b16 %v2027, %v2020
    %v2434 = vpack.c.b16 %v2028, %v2021
    %v2435 = vpack.c.b16 %v2029, %v2022
    %v2436 = vpack.c.b16 %v2030, %v2023
    %v2437 = vpack.c.b16 %v2031, %v2024
    %v2438 = vpack.c.b16 %v2032, %v2025
    %v2439 = vpack.c.b16 %v2040, %v2033
    %v2440 = vpack.c.b16 %v2041, %v2034
    %v2441 = vpack.c.b16 %v2042, %v2035
    %v2442 = vpack.c.b16 %v2043, %v2036
    %v2443 = vpack.c.b16 %v2044, %v2037
    %v2444 = vpack.c.b16 %v2045, %v2038
    %v2445 = vpack.c.b16 %v2046, %v2039
    %v2446 = vpack.c.b16 %v2054, %v2047
    %v2447 = vpack.c.b16 %v2055, %v2048
    %v2448 = vpack.c.b16 %v2056, %v2049
    %v2449 = vpack.c.b16 %v2057, %v2050
    %v2450 = vpack.c.b16 %v2058, %v2051
    %v2451 = vpack.c.b16 %v2059, %v2052
    %v2452 = vpack.c.b16 %v2060, %v2053
    %v2453 = vpack.c.b16 %v2068, %v2061
    %v2454 = vpack.c.b16 %v2069, %v2062
    %v2455 = vpack.c.b16 %v2070, %v2063
    %v2456 = vpack.c.b16 %v2071, %v2064
    %v2457 = vpack.c.b16 %v2072, %v2065
    %v2458 = vpack.c.b16 %v2073, %v2066
    %v2459 = vpack.c.b16 %v2074, %v2067
    %v2460 = vpack.c.b16 %v2082, %v2075
    %v2461 = vpack.c.b16 %v2083, %v2076
    %v2462 = vpack.c.b16 %v2084, %v2077
    %v2463 = vpack.c.b16 %v2085, %v2078
    %v2464 = vpack.c.b16 %v2086, %v2079
    %v2465 = vpack.c.b16 %v2087, %v2080
    %v2466 = vpack.c.b16 %v2088, %v2081
    %v2467 = vpack.c.b16 %v2096, %v2089
    %v2468 = vpack.c.b16 %v2097, %v2090
    %v2469 = vpack.c.b16 %v2098, %v2091
    %v2470 = vpack.c.b16 %v2099, %v2092
    %v2471 = vpack.c.b16 %v2100, %v2093
    %v2472 = vpack.c.b16 %v2101, %v2094
    %v2473 = vpack.c.b16 %v2102, %v2095
    %v2474 = vpack.c.b16 %v2110, %v2103
    %v2475 = vpack.c.b16 %v2111, %v2104
    %v2476 = vpack.c.b16 %v2112, %v2105
    %v2477 = vpack.c.b16 %v2113, %v2106
    %v2478 = vpack.c.b16 %v2114, %v2107
    %v2479 = vpack.c.b16 %v2115, %v2108
    %v2480 = vpack.c.b16 %v2116, %v2109
    %v2481 = vpack.c.b16 %v2124, %v2117
    %v2482 = vpack.c.b16 %v2125, %v2118
    %v2483 = vpack.c.b16 %v2126, %v2119
    %v2484 = vpack.c.b16 %v2127, %v2120
    %v2485 = vpack.c.b16 %v2128, %v2121
    %v2486 = vpack.c.b16 %v2129, %v2122
    %v2487 = vpack.c.b16 %v2130, %v2123
    %v2488 = vpack.c.b16 %v2138, %v2131
    %v2489 = vpack.c.b16 %v2139, %v2132
    %v2490 = vpack.c.b16 %v2140, %v2133
    %v2491 = vpack.c.b16 %v2141, %v2134
    %v2492 = vpack.c.b16 %v2142, %v2135
    %v2493 = vpack.c.b16 %v2143, %v2136
    %v2494 = vpack.c.b16 %v2144, %v2137
    %v2495 = vpack.c.b16 %v2152, %v2145
    %v2496 = vpack.c.b16 %v2153, %v2146
    %v2497 = vpack.c.b16 %v2154, %v2147
    %v2498 = vpack.c.b16 %v2155, %v2148
    %v2499 = vpack.c.b16 %v2156, %v2149
    %v2500 = vpack.c.b16 %v2157, %v2150
    %v2501 = vpack.c.b16 %v2158, %v2151
    %v2502 = vpack.c.b16 %v2166, %v2159
    %v2503 = vpack.c.b16 %v2167, %v2160
    %v2504 = vpack.c.b16 %v2168, %v2161
    %v2505 = vpack.c.b16 %v2169, %v2162
    %v2506 = vpack.c.b16 %v2170, %v2163
    %v2507 = vpack.c.b16 %v2171, %v2164
    %v2508 = vpack.c.b16 %v2172, %v2165
    %v2509 = vpack.c.b16 %v2180, %v2173
    %v2510 = vpack.c.b16 %v2181, %v2174
    %v2511 = vpack.c.b16 %v2182, %v2175
    %v2512 = vpack.c.b16 %v2183, %v2176
    %v2513 = vpack.c.b16 %v2184, %v2177
    %v2514 = vpack.c.b16 %v2185, %v2178
    %v2515 = vpack.c.b16 %v2186, %v2179
    %v2516 = vpack.c.b16 %v2194, %v2187
    %v2517 = vpack.c.b16 %v2195, %v2188
    %v2518 = vpack.c.b16 %v2196, %v2189
    %v2519 = vpack.c.b16 %v2197, %v2190
    %v2520 = vpack.c.b16 %v2198, %v2191
    %v2521 = vpack.c.b16 %v2199, %v2192
    %v2522 = vpack.c.b16 %v2200, %v2193
    %v2523 = vpack.c.b16 %v2208, %v2201
    %v2524 = vpack.c.b16 %v2209, %v2202
    %v2525 = vpack.c.b16 %v2210, %v2203
    %v2526 = vpack.c.b16 %v2211, %v2204
    %v2527 = vpack.c.b16 %v2212, %v2205
    %v2528 = vpack.c.b16 %v2213, %v2206
    %v2529 = vpack.c.b16 %v2214, %v2207
    %v2530 = vpack.c.b16 %v2222, %v2215
    %v2531 = vpack.c.b16 %v2223, %v2216
    %v2532 = vpack.c.b16 %v2224, %v2217
    %v2533 = vpack.c.b16 %v2225, %v2218
    %v2534 = vpack.c.b16 %v2226, %v2219
    %v2535 = vpack.c.b16 %v2227, %v2220
    %v2536 = vpack.c.b16 %v2228, %v2221
    %v2537 = vpack.c.b16 %v2236, %v2229
    %v2538 = vpack.c.b16 %v2237, %v2230
    %v2539 = vpack.c.b16 %v2238, %v2231
    %v2540 = vpack.c.b16 %v2239, %v2232
    %v2541 = vpack.c.b16 %v2240, %v2233
    %v2542 = vpack.c.b16 %v2241, %v2234
    %v2543 = vpack.c.b16 %v2242, %v2235
    %v2544 = vpack.c.b16 %v2250, %v2243
    %v2545 = vpack.c.b16 %v2251, %v2244
    %v2546 = vpack.c.b16 %v2252, %v2245
    %v2547 = vpack.c.b16 %v2253, %v2246
    %v2548 = vpack.c.b16 %v2254, %v2247
    %v2549 = vpack.c.b16 %v2255, %v2248
    %v2550 = vpack.c.b16 %v2256, %v2249
    %v2551 = vpack.c.b16 %v2264, %v2257
    %v2552 = vpack.c.b16 %v2265, %v2258
    %v2553 = vpack.c.b16 %v2266, %v2259
    %v2554 = vpack.c.b16 %v2267, %v2260
    %v2555 = vpack.c.b16 %v2268, %v2261
    %v2556 = vpack.c.b16 %v2269, %v2262
    %v2557 = vpack.c.b16 %v2270, %v2263
    %v2558 = vpack.c.b16 %v2278, %v2271
    %v2559 = vpack.c.b16 %v2279, %v2272
    %v2560 = vpack.c.b16 %v2280, %v2273
    %v2561 = vpack.c.b16 %v2281, %v2274
    %v2562 = vpack.c.b16 %v2282, %v2275
    %v2563 = vpack.c.b16 %v2283, %v2276
    %v2564 = vpack.c.b16 %v2284, %v2277
    %v2565 = vpack.c.b16 %v2292, %v2285
    %v2566 = vpack.c.b16 %v2293, %v2286
    %v2567 = vpack.c.b16 %v2294, %v2287
    %v2568 = vpack.c.b16 %v2295, %v2288
    %v2569 = vpack.c.b16 %v2296, %v2289
    %v2570 = vpack.c.b16 %v2297, %v2290
    %v2571 = vpack.c.b16 %v2298, %v2291
    %v2572 = vpack.c.b16 %v2306, %v2299
    %v2573 = vpack.c.b16 %v2307, %v2300
    %v2574 = vpack.c.b16 %v2308, %v2301
    %v2575 = vpack.c.b16 %v2309, %v2302
    %v2576 = vpack.c.b16 %v2310, %v2303
    %v2577 = vpack.c.b16 %v2311, %v2304
    %v2578 = vpack.c.b16 %v2312, %v2305
    %v2579 = vpack.c.b16 %v2320, %v2313
    %v2580 = vpack.c.b16 %v2321, %v2314
    %v2581 = vpack.c.b16 %v2322, %v2315
    %v2582 = vpack.c.b16 %v2323, %v2316
    %v2583 = vpack.c.b16 %v2324, %v2317
    %v2584 = vpack.c.b16 %v2325, %v2318
    %v2585 = vpack.c.b16 %v2326, %v2319
    %v2586 = vpack.c.b16 %v2334, %v2327
    %v2587 = vpack.c.b16 %v2335, %v2328
    %v2588 = vpack.c.b16 %v2336, %v2329
    %v2589 = vpack.c.b16 %v2337, %v2330
    %v2590 = vpack.c.b16 %v2338, %v2331
    %v2591 = vpack.c.b16 %v2339, %v2332
    %v2592 = vpack.c.b16 %v2340, %v2333
    %v2593 = vpack.c.b16 %v2348, %v2341
    %v2594 = vpack.c.b16 %v2349, %v2342
    %v2595 = vpack.c.b16 %v2350, %v2343
    %v2596 = vpack.c.b16 %v2351, %v2344
    %v2597 = vpack.c.b16 %v2352, %v2345
    %v2598 = vpack.c.b16 %v2353, %v2346
    %v2599 = vpack.c.b16 %v2354, %v2347
    %v2600 = vpack.c.b16 %v2362, %v2355
    %v2601 = vpack.c.b16 %v2363, %v2356
    %v2602 = vpack.c.b16 %v2364, %v2357
    %v2603 = vpack.c.b16 %v2365, %v2358
    %v2604 = vpack.c.b16 %v2366, %v2359
    %v2605 = vpack.c.b16 %v2367, %v2360
    %v2606 = vpack.c.b16 %v2368, %v2361
    %v2607 = vpack.c.b16 %v2376, %v2369
    %v2608 = vpack.c.b16 %v2377, %v2370
    %v2609 = vpack.c.b16 %v2378, %v2371
    %v2610 = vpack.c.b16 %v2379, %v2372
    %v2611 = vpack.c.b16 %v2380, %v2373
    %v2612 = vpack.c.b16 %v2381, %v2374
    %v2613 = vpack.c.b16 %v2382, %v2375
    %v2614 = vpack.c.b16 %v2390, %v2383
    %v2615 = vpack.c.b16 %v2391, %v2384
    %v2616 = vpack.c.b16 %v2392, %v2385
    %v2617 = vpack.c.b16 %v2393, %v2386
    %v2618 = vpack.c.b16 %v2394, %v2387
    %v2619 = vpack.c.b16 %v2395, %v2388
    %v2620 = vpack.c.b16 %v2396, %v2389
    %2845 = vmatprep.subr.bf16.mxu0 %v2447
    %2846 = vmatpush1.bf16.msra.mxu0 %v2446
    %2847 = vmatprep.subr.bf16.mxu0 %v2440
    %2848 = vmatpush1.bf16.msra.mxu0 %v2439
    %2849 = vmatprep.subr.bf16.mxu0 %v2433
    %2850 = vmatpush1.bf16.msra.mxu0 %v2432
    %2851 = vmatprep.subr.bf16.mxu0 %v2426
    %2852 = vmatpush1.bf16.msra.mxu0 %v2425
    %2853 = vmatprep.subr.bf16.mxu0 %v2419
    %2854 = vmatpush1.bf16.msra.mxu0 %v2418
    %2855 = vmatprep.subr.bf16.mxu0 %v2412
    %2856 = vmatpush1.bf16.msra.mxu0 %v2411
    %2857 = vmatprep.subr.bf16.mxu0 %v2405
    %2858 = vmatpush1.bf16.msra.mxu0 %v2404
    %2859 = vmatprep.subr.bf16.mxu0 %v2398
    %2860 = vmatpush1.bf16.msra.mxu0 %v2397
    %2861 = vmatprep.subr.bf16.mxu0 %v2503
    %2862 = vmatpush2.bf16.msra.mxu0 %v2502
    %2863 = vmatprep.subr.bf16.mxu0 %v2496
    %2864 = vmatpush2.bf16.msra.mxu0 %v2495
    %2865 = vmatprep.subr.bf16.mxu0 %v2489
    %2866 = vmatpush2.bf16.msra.mxu0 %v2488
    %2867 = vmatprep.subr.bf16.mxu0 %v2482
    %2868 = vmatpush2.bf16.msra.mxu0 %v2481
    %2869 = vmatprep.subr.bf16.mxu0 %v2475
    %2870 = vmatpush2.bf16.msra.mxu0 %v2474
    %2871 = vmatprep.subr.bf16.mxu0 %v2468
    %2872 = vmatpush2.bf16.msra.mxu0 %v2467
    %2873 = vmatprep.subr.bf16.mxu0 %v2461
    %2874 = vmatpush2.bf16.msra.mxu0 %v2460
    %2875 = vmatprep.subr.bf16.mxu0 %v2454
    %2876 = vmatpush2.bf16.msra.mxu0 %v2453
    %2877 = vmatprep.mubr.bf16.mxu0 %v1397
    %2878 = vmatmul.mubr.bf16.gmra.mxu0 %v1396
    %v2879 = vpop.f32.mrf.mxu0
    %v2880 = vadd.f32 %v1661, %v2879
    %v2881 = vpop.f32.mrf.mxu0
    %v2882 = vadd.f32 %v1665, %v2881
    %v2883 = vpop.f32.mrf.mxu0
    %v2884 = vadd.f32 %v1661, %v2883
    %v2885 = vpop.f32.mrf.mxu0
    %v2886 = vadd.f32 %v1665, %v2885
    %2887 = vdwg.mxu0
    %2888 = vmatprep.subr.bf16.mxu0 %v2559
    %2889 = vmatpush1.bf16.msra.mxu0 %v2558
    %2890 = vmatprep.subr.bf16.mxu0 %v2552
    %2891 = vmatpush1.bf16.msra.mxu0 %v2551
    %2892 = vmatprep.subr.bf16.mxu0 %v2545
    %2893 = vmatpush1.bf16.msra.mxu0 %v2544
    %2894 = vmatprep.subr.bf16.mxu0 %v2538
    %2895 = vmatpush1.bf16.msra.mxu0 %v2537
    %2896 = vmatprep.subr.bf16.mxu0 %v2531
    %2897 = vmatpush1.bf16.msra.mxu0 %v2530
    %2898 = vmatprep.subr.bf16.mxu0 %v2524
    %2899 = vmatpush1.bf16.msra.mxu0 %v2523
    %2900 = vmatprep.subr.bf16.mxu0 %v2517
    %2901 = vmatpush1.bf16.msra.mxu0 %v2516
    %2902 = vmatprep.subr.bf16.mxu0 %v2510
    %2903 = vmatpush1.bf16.msra.mxu0 %v2509
    %2904 = vmatprep.subr.bf16.mxu0 %v2615
    %2905 = vmatpush2.bf16.msra.mxu0 %v2614
    %2906 = vmatprep.subr.bf16.mxu0 %v2608
    %2907 = vmatpush2.bf16.msra.mxu0 %v2607
    %2908 = vmatprep.subr.bf16.mxu0 %v2601
    %2909 = vmatpush2.bf16.msra.mxu0 %v2600
    %2910 = vmatprep.subr.bf16.mxu0 %v2594
    %2911 = vmatpush2.bf16.msra.mxu0 %v2593
    %2912 = vmatprep.subr.bf16.mxu0 %v2587
    %2913 = vmatpush2.bf16.msra.mxu0 %v2586
    %2914 = vmatprep.subr.bf16.mxu0 %v2580
    %2915 = vmatpush2.bf16.msra.mxu0 %v2579
    %2916 = vmatprep.subr.bf16.mxu0 %v2573
    %2917 = vmatpush2.bf16.msra.mxu0 %v2572
    %2918 = vmatprep.subr.bf16.mxu0 %v2566
    %2919 = vmatpush2.bf16.msra.mxu0 %v2565
    %2920 = vmatprep.mubr.bf16.mxu0 %v1399
    %2921 = vmatmul.mubr.bf16.gmra.mxu0 %v1398
    %v2922 = vpop.f32.mrf.mxu0
    %v2923 = vadd.f32 %v2880, %v2922
    %v2924 = vpop.f32.mrf.mxu0
    %v2925 = vadd.f32 %v2882, %v2924
    %v2926 = vpop.f32.mrf.mxu0
    %v2927 = vadd.f32 %v2884, %v2926
    %v2928 = vpop.f32.mrf.mxu0
    %v2929 = vadd.f32 %v2886, %v2928
    %2930 = vdwg.mxu0
    %2931 = vmatprep.subr.bf16.mxu0 %v2449
    %2932 = vmatpush1.bf16.msra.mxu0 %v2448
    %2933 = vmatprep.subr.bf16.mxu0 %v2442
    %2934 = vmatpush1.bf16.msra.mxu0 %v2441
    %2935 = vmatprep.subr.bf16.mxu0 %v2435
    %2936 = vmatpush1.bf16.msra.mxu0 %v2434
    %2937 = vmatprep.subr.bf16.mxu0 %v2428
    %2938 = vmatpush1.bf16.msra.mxu0 %v2427
    %2939 = vmatprep.subr.bf16.mxu0 %v2421
    %2940 = vmatpush1.bf16.msra.mxu0 %v2420
    %2941 = vmatprep.subr.bf16.mxu0 %v2414
    %2942 = vmatpush1.bf16.msra.mxu0 %v2413
    %2943 = vmatprep.subr.bf16.mxu0 %v2407
    %2944 = vmatpush1.bf16.msra.mxu0 %v2406
    %2945 = vmatprep.subr.bf16.mxu0 %v2400
    %2946 = vmatpush1.bf16.msra.mxu0 %v2399
    %2947 = vmatprep.subr.bf16.mxu0 %v2505
    %2948 = vmatpush2.bf16.msra.mxu0 %v2504
    %2949 = vmatprep.subr.bf16.mxu0 %v2498
    %2950 = vmatpush2.bf16.msra.mxu0 %v2497
    %2951 = vmatprep.subr.bf16.mxu0 %v2491
    %2952 = vmatpush2.bf16.msra.mxu0 %v2490
    %2953 = vmatprep.subr.bf16.mxu0 %v2484
    %2954 = vmatpush2.bf16.msra.mxu0 %v2483
    %2955 = vmatprep.subr.bf16.mxu0 %v2477
    %2956 = vmatpush2.bf16.msra.mxu0 %v2476
    %2957 = vmatprep.subr.bf16.mxu0 %v2470
    %2958 = vmatpush2.bf16.msra.mxu0 %v2469
    %2959 = vmatprep.subr.bf16.mxu0 %v2463
    %2960 = vmatpush2.bf16.msra.mxu0 %v2462
    %2961 = vmatprep.subr.bf16.mxu0 %v2456
    %2962 = vmatpush2.bf16.msra.mxu0 %v2455
    %2963 = vmatprep.mubr.bf16.mxu0 %v1397
    %2964 = vmatmul.mubr.bf16.gmra.mxu0 %v1396
    %v2965 = vpop.f32.mrf.mxu0
    %v2966 = vadd.f32 %v1669, %v2965
    %v2967 = vpop.f32.mrf.mxu0
    %v2968 = vadd.f32 %v1673, %v2967
    %v2969 = vpop.f32.mrf.mxu0
    %v2970 = vadd.f32 %v1669, %v2969
    %v2971 = vpop.f32.mrf.mxu0
    %v2972 = vadd.f32 %v1673, %v2971
    %2973 = vdwg.mxu0
    %2974 = vmatprep.subr.bf16.mxu0 %v2561
    %2975 = vmatpush1.bf16.msra.mxu0 %v2560
    %2976 = vmatprep.subr.bf16.mxu0 %v2554
    %2977 = vmatpush1.bf16.msra.mxu0 %v2553
    %2978 = vmatprep.subr.bf16.mxu0 %v2547
    %2979 = vmatpush1.bf16.msra.mxu0 %v2546
    %2980 = vmatprep.subr.bf16.mxu0 %v2540
    %2981 = vmatpush1.bf16.msra.mxu0 %v2539
    %2982 = vmatprep.subr.bf16.mxu0 %v2533
    %2983 = vmatpush1.bf16.msra.mxu0 %v2532
    %2984 = vmatprep.subr.bf16.mxu0 %v2526
    %2985 = vmatpush1.bf16.msra.mxu0 %v2525
    %2986 = vmatprep.subr.bf16.mxu0 %v2519
    %2987 = vmatpush1.bf16.msra.mxu0 %v2518
    %2988 = vmatprep.subr.bf16.mxu0 %v2512
    %2989 = vmatpush1.bf16.msra.mxu0 %v2511
    %2990 = vmatprep.subr.bf16.mxu0 %v2617
    %2991 = vmatpush2.bf16.msra.mxu0 %v2616
    %2992 = vmatprep.subr.bf16.mxu0 %v2610
    %2993 = vmatpush2.bf16.msra.mxu0 %v2609
    %2994 = vmatprep.subr.bf16.mxu0 %v2603
    %2995 = vmatpush2.bf16.msra.mxu0 %v2602
    %2996 = vmatprep.subr.bf16.mxu0 %v2596
    %2997 = vmatpush2.bf16.msra.mxu0 %v2595
    %2998 = vmatprep.subr.bf16.mxu0 %v2589
    %2999 = vmatpush2.bf16.msra.mxu0 %v2588
    %3000 = vmatprep.subr.bf16.mxu0 %v2582
    %3001 = vmatpush2.bf16.msra.mxu0 %v2581
    %3002 = vmatprep.subr.bf16.mxu0 %v2575
    %3003 = vmatpush2.bf16.msra.mxu0 %v2574
    %3004 = vmatprep.subr.bf16.mxu0 %v2568
    %3005 = vmatpush2.bf16.msra.mxu0 %v2567
    %3006 = vmatprep.mubr.bf16.mxu0 %v1399
    %3007 = vmatmul.mubr.bf16.gmra.mxu0 %v1398
    %v3008 = vpop.f32.mrf.mxu0
    %v3009 = vadd.f32 %v2966, %v3008
    %v3010 = vpop.f32.mrf.mxu0
    %v3011 = vadd.f32 %v2968, %v3010
    %v3012 = vpop.f32.mrf.mxu0
    %v3013 = vadd.f32 %v2970, %v3012
    %v3014 = vpop.f32.mrf.mxu0
    %v3015 = vadd.f32 %v2972, %v3014
    %3016 = vdwg.mxu0
    %3017 = vmatprep.subr.bf16.mxu0 %v2451
    %3018 = vmatpush1.bf16.msra.mxu0 %v2450
    %3019 = vmatprep.subr.bf16.mxu0 %v2444
    %3020 = vmatpush1.bf16.msra.mxu0 %v2443
    %3021 = vmatprep.subr.bf16.mxu0 %v2437
    %3022 = vmatpush1.bf16.msra.mxu0 %v2436
    %3023 = vmatprep.subr.bf16.mxu0 %v2430
    %3024 = vmatpush1.bf16.msra.mxu0 %v2429
    %3025 = vmatprep.subr.bf16.mxu0 %v2423
    %3026 = vmatpush1.bf16.msra.mxu0 %v2422
    %3027 = vmatprep.subr.bf16.mxu0 %v2416
    %3028 = vmatpush1.bf16.msra.mxu0 %v2415
    %3029 = vmatprep.subr.bf16.mxu0 %v2409
    %3030 = vmatpush1.bf16.msra.mxu0 %v2408
    %3031 = vmatprep.subr.bf16.mxu0 %v2402
    %3032 = vmatpush1.bf16.msra.mxu0 %v2401
    %3033 = vmatprep.subr.bf16.mxu0 %v2507
    %3034 = vmatpush2.bf16.msra.mxu0 %v2506
    %3035 = vmatprep.subr.bf16.mxu0 %v2500
    %3036 = vmatpush2.bf16.msra.mxu0 %v2499
    %3037 = vmatprep.subr.bf16.mxu0 %v2493
    %3038 = vmatpush2.bf16.msra.mxu0 %v2492
    %3039 = vmatprep.subr.bf16.mxu0 %v2486
    %3040 = vmatpush2.bf16.msra.mxu0 %v2485
    %3041 = vmatprep.subr.bf16.mxu0 %v2479
    %3042 = vmatpush2.bf16.msra.mxu0 %v2478
    %3043 = vmatprep.subr.bf16.mxu0 %v2472
    %3044 = vmatpush2.bf16.msra.mxu0 %v2471
    %3045 = vmatprep.subr.bf16.mxu0 %v2465
    %3046 = vmatpush2.bf16.msra.mxu0 %v2464
    %3047 = vmatprep.subr.bf16.mxu0 %v2458
    %3048 = vmatpush2.bf16.msra.mxu0 %v2457
    %3049 = vmatprep.mubr.bf16.mxu0 %v1397
    %3050 = vmatmul.mubr.bf16.gmra.mxu0 %v1396
    %v3051 = vpop.f32.mrf.mxu0
    %v3052 = vadd.f32 %v1677, %v3051
    %v3053 = vpop.f32.mrf.mxu0
    %v3054 = vadd.f32 %v1681, %v3053
    %v3055 = vpop.f32.mrf.mxu0
    %v3056 = vadd.f32 %v1677, %v3055
    %v3057 = vpop.f32.mrf.mxu0
    %v3058 = vadd.f32 %v1681, %v3057
    %3059 = vdwg.mxu0
    %3060 = vmatprep.subr.bf16.mxu0 %v2563
    %3061 = vmatpush1.bf16.msra.mxu0 %v2562
    %3062 = vmatprep.subr.bf16.mxu0 %v2556
    %3063 = vmatpush1.bf16.msra.mxu0 %v2555
    %3064 = vmatprep.subr.bf16.mxu0 %v2549
    %3065 = vmatpush1.bf16.msra.mxu0 %v2548
    %3066 = vmatprep.subr.bf16.mxu0 %v2542
    %3067 = vmatpush1.bf16.msra.mxu0 %v2541
    %3068 = vmatprep.subr.bf16.mxu0 %v2535
    %3069 = vmatpush1.bf16.msra.mxu0 %v2534
    %3070 = vmatprep.subr.bf16.mxu0 %v2528
    %3071 = vmatpush1.bf16.msra.mxu0 %v2527
    %3072 = vmatprep.subr.bf16.mxu0 %v2521
    %3073 = vmatpush1.bf16.msra.mxu0 %v2520
    %3074 = vmatprep.subr.bf16.mxu0 %v2514
    %3075 = vmatpush1.bf16.msra.mxu0 %v2513
    %3076 = vmatprep.subr.bf16.mxu0 %v2619
    %3077 = vmatpush2.bf16.msra.mxu0 %v2618
    %3078 = vmatprep.subr.bf16.mxu0 %v2612
    %3079 = vmatpush2.bf16.msra.mxu0 %v2611
    %3080 = vmatprep.subr.bf16.mxu0 %v2605
    %3081 = vmatpush2.bf16.msra.mxu0 %v2604
    %3082 = vmatprep.subr.bf16.mxu0 %v2598
    %3083 = vmatpush2.bf16.msra.mxu0 %v2597
    %3084 = vmatprep.subr.bf16.mxu0 %v2591
    %3085 = vmatpush2.bf16.msra.mxu0 %v2590
    %3086 = vmatprep.subr.bf16.mxu0 %v2584
    %3087 = vmatpush2.bf16.msra.mxu0 %v2583
    %3088 = vmatprep.subr.bf16.mxu0 %v2577
    %3089 = vmatpush2.bf16.msra.mxu0 %v2576
    %3090 = vmatprep.subr.bf16.mxu0 %v2570
    %3091 = vmatpush2.bf16.msra.mxu0 %v2569
    %3092 = vmatprep.mubr.bf16.mxu0 %v1399
    %3093 = vmatmul.mubr.bf16.gmra.mxu0 %v1398
    %v3094 = vpop.f32.mrf.mxu0
    %v3095 = vadd.f32 %v3052, %v3094
    %v3096 = vpop.f32.mrf.mxu0
    %v3097 = vadd.f32 %v3054, %v3096
    %v3098 = vpop.f32.mrf.mxu0
    %v3099 = vadd.f32 %v3056, %v3098
    %v3100 = vpop.f32.mrf.mxu0
    %v3101 = vadd.f32 %v3058, %v3100
    %3102 = vdwg.mxu0
    %3103 = vmatprep.subr.bf16.mxu0 0
    %3104 = vmatpush1.bf16.msra.mxu0 %v2452
    %3105 = vmatprep.subr.bf16.mxu0 0
    %3106 = vmatpush1.bf16.msra.mxu0 %v2445
    %3107 = vmatprep.subr.bf16.mxu0 0
    %3108 = vmatpush1.bf16.msra.mxu0 %v2438
    %3109 = vmatprep.subr.bf16.mxu0 0
    %3110 = vmatpush1.bf16.msra.mxu0 %v2431
    %3111 = vmatprep.subr.bf16.mxu0 0
    %3112 = vmatpush1.bf16.msra.mxu0 %v2424
    %3113 = vmatprep.subr.bf16.mxu0 0
    %3114 = vmatpush1.bf16.msra.mxu0 %v2417
    %3115 = vmatprep.subr.bf16.mxu0 0
    %3116 = vmatpush1.bf16.msra.mxu0 %v2410
    %3117 = vmatprep.subr.bf16.mxu0 0
    %3118 = vmatpush1.bf16.msra.mxu0 %v2403
    %3119 = vmatprep.subr.bf16.mxu0 0
    %3120 = vmatpush2.bf16.msra.mxu0 %v2508
    %3121 = vmatprep.subr.bf16.mxu0 0
    %3122 = vmatpush2.bf16.msra.mxu0 %v2501
    %3123 = vmatprep.subr.bf16.mxu0 0
    %3124 = vmatpush2.bf16.msra.mxu0 %v2494
    %3125 = vmatprep.subr.bf16.mxu0 0
    %3126 = vmatpush2.bf16.msra.mxu0 %v2487
    %3127 = vmatprep.subr.bf16.mxu0 0
    %3128 = vmatpush2.bf16.msra.mxu0 %v2480
    %3129 = vmatprep.subr.bf16.mxu0 0
    %3130 = vmatpush2.bf16.msra.mxu0 %v2473
    %3131 = vmatprep.subr.bf16.mxu0 0
    %3132 = vmatpush2.bf16.msra.mxu0 %v2466
    %3133 = vmatprep.subr.bf16.mxu0 0
    %3134 = vmatpush2.bf16.msra.mxu0 %v2459
    %3135 = vmatprep.mubr.bf16.mxu0 %v1397
    %3136 = vmatmul.mubr.bf16.gmra.mxu0 %v1396
    %v3137 = vpop.f32.mrf.mxu0
    %v3138 = vadd.f32 %v1685, %v3137
    %v3139 = vpop.f32.mrf.mxu0
    %v3140 = vpop.f32.mrf.mxu0
    %v3141 = vadd.f32 %v1685, %v3140
    %v3142 = vpop.f32.mrf.mxu0
    %3143 = vdwg.mxu0
    %3144 = vmatprep.subr.bf16.mxu0 0
    %3145 = vmatpush1.bf16.msra.mxu0 %v2564
    %3146 = vmatprep.subr.bf16.mxu0 0
    %3147 = vmatpush1.bf16.msra.mxu0 %v2557
    %3148 = vmatprep.subr.bf16.mxu0 0
    %3149 = vmatpush1.bf16.msra.mxu0 %v2550
    %3150 = vmatprep.subr.bf16.mxu0 0
    %3151 = vmatpush1.bf16.msra.mxu0 %v2543
    %3152 = vmatprep.subr.bf16.mxu0 0
    %3153 = vmatpush1.bf16.msra.mxu0 %v2536
    %3154 = vmatprep.subr.bf16.mxu0 0
    %3155 = vmatpush1.bf16.msra.mxu0 %v2529
    %3156 = vmatprep.subr.bf16.mxu0 0
    %3157 = vmatpush1.bf16.msra.mxu0 %v2522
    %3158 = vmatprep.subr.bf16.mxu0 0
    %3159 = vmatpush1.bf16.msra.mxu0 %v2515
    %3160 = vmatprep.subr.bf16.mxu0 0
    %3161 = vmatpush2.bf16.msra.mxu0 %v2620
    %3162 = vmatprep.subr.bf16.mxu0 0
    %3163 = vmatpush2.bf16.msra.mxu0 %v2613
    %3164 = vmatprep.subr.bf16.mxu0 0
    %3165 = vmatpush2.bf16.msra.mxu0 %v2606
    %3166 = vmatprep.subr.bf16.mxu0 0
    %3167 = vmatpush2.bf16.msra.mxu0 %v2599
    %3168 = vmatprep.subr.bf16.mxu0 0
    %3169 = vmatpush2.bf16.msra.mxu0 %v2592
    %3170 = vmatprep.subr.bf16.mxu0 0
    %3171 = vmatpush2.bf16.msra.mxu0 %v2585
    %3172 = vmatprep.subr.bf16.mxu0 0
    %3173 = vmatpush2.bf16.msra.mxu0 %v2578
    %3174 = vmatprep.subr.bf16.mxu0 0
    %3175 = vmatpush2.bf16.msra.mxu0 %v2571
    %3176 = vmatprep.mubr.bf16.mxu0 %v1399
    %3177 = vmatmul.mubr.bf16.gmra.mxu0 %v1398
    %v3178 = vpop.f32.mrf.mxu0
    %v3179 = vadd.f32 %v3138, %v3178
    %v3180 = vpop.f32.mrf.mxu0
    %v3181 = vpop.f32.mrf.mxu0
    %v3182 = vadd.f32 %v3141, %v3181
    %v3183 = vpop.f32.mrf.mxu0
    %3184 = vdwg.mxu0
    %v3185 = vsub.f32 0.0, %v2923
    %v3186 = vsub.f32 0.0, %v2925
    %v3187 = vsub.f32 0.0, %v3009
    %v3188 = vsub.f32 0.0, %v3011
    %v3189 = vsub.f32 0.0, %v3095
    %v3190 = vsub.f32 0.0, %v3097
    %v3191 = vsub.f32 0.0, %v3179
    %v3192 = vsub.f32 0.0, %v2927
    %v3193 = vsub.f32 0.0, %v2929
    %v3194 = vsub.f32 0.0, %v3013
    %v3195 = vsub.f32 0.0, %v3015
    %v3196 = vsub.f32 0.0, %v3099
    %v3197 = vsub.f32 0.0, %v3101
    %v3198 = vsub.f32 0.0, %v3182
    %v3199 = vmul.f32 %v3185, 1.442695
    %v3200 = vpow.pop %v3199
    %v3201 = vmul.f32 %v3186, 1.442695
    %v3202 = vpow.pop %v3201
    %v3203 = vmul.f32 %v3187, 1.442695
    %v3204 = vpow.pop %v3203
    %v3205 = vmul.f32 %v3188, 1.442695
    %v3206 = vpow.pop %v3205
    %v3207 = vmul.f32 %v3189, 1.442695
    %v3208 = vpow.pop %v3207
    %v3209 = vmul.f32 %v3190, 1.442695
    %v3210 = vpow.pop %v3209
    %v3211 = vmul.f32 %v3191, 1.442695
    %v3212 = vpow.pop %v3211
    %v3213 = vmul.f32 %v3192, 1.442695
    %v3214 = vpow.pop %v3213
    %v3215 = vmul.f32 %v3193, 1.442695
    %v3216 = vpow.pop %v3215
    %v3217 = vmul.f32 %v3194, 1.442695
    %v3218 = vpow.pop %v3217
    %v3219 = vmul.f32 %v3195, 1.442695
    %v3220 = vpow.pop %v3219
    %v3221 = vmul.f32 %v3196, 1.442695
    %v3222 = vpow.pop %v3221
    %v3223 = vmul.f32 %v3197, 1.442695
    %v3224 = vpow.pop %v3223
    %v3225 = vmul.f32 %v3198, 1.442695
    %v3226 = vpow.pop %v3225
    %v3227 = vadd.f32 %v3200, 1.0
    %v3228 = vadd.f32 %v3202, 1.0
    %v3229 = vadd.f32 %v3204, 1.0
    %v3230 = vadd.f32 %v3206, 1.0
    %v3231 = vadd.f32 %v3208, 1.0
    %v3232 = vadd.f32 %v3210, 1.0
    %v3233 = vadd.f32 %v3212, 1.0
    %v3234 = vadd.f32 %v3214, 1.0
    %v3235 = vadd.f32 %v3216, 1.0
    %v3236 = vadd.f32 %v3218, 1.0
    %v3237 = vadd.f32 %v3220, 1.0
    %v3238 = vadd.f32 %v3222, 1.0
    %v3239 = vadd.f32 %v3224, 1.0
    %v3240 = vadd.f32 %v3226, 1.0
    %v3241 = vrcp.pop %v3227
    %v3242 = vmul.f32 1.0, %v3241
    %v3243 = vrcp.pop %v3228
    %v3244 = vmul.f32 1.0, %v3243
    %v3245 = vrcp.pop %v3229
    %v3246 = vmul.f32 1.0, %v3245
    %v3247 = vrcp.pop %v3230
    %v3248 = vmul.f32 1.0, %v3247
    %v3249 = vrcp.pop %v3231
    %v3250 = vmul.f32 1.0, %v3249
    %v3251 = vrcp.pop %v3232
    %v3252 = vmul.f32 1.0, %v3251
    %v3253 = vrcp.pop %v3233
    %v3254 = vmul.f32 1.0, %v3253
    %v3255 = vrcp.pop %v3234
    %v3256 = vmul.f32 1.0, %v3255
    %v3257 = vrcp.pop %v3235
    %v3258 = vmul.f32 1.0, %v3257
    %v3259 = vrcp.pop %v3236
    %v3260 = vmul.f32 1.0, %v3259
    %v3261 = vrcp.pop %v3237
    %v3262 = vmul.f32 1.0, %v3261
    %v3263 = vrcp.pop %v3238
    %v3264 = vmul.f32 1.0, %v3263
    %v3265 = vrcp.pop %v3239
    %v3266 = vmul.f32 1.0, %v3265
    %v3267 = vrcp.pop %v3240
    %v3268 = vmul.f32 1.0, %v3267
    %3269 = vst [vmem:[#allocation13] sm:$0xff] %v3242
    %3270 = vst [vmem:[#allocation13 + $0x8] sm:$0xff] %v3244
    %3271 = vst [vmem:[#allocation13 + $0x10] sm:$0xff] %v3246
    %3272 = vst [vmem:[#allocation13 + $0x18] sm:$0xff] %v3248
    %3273 = vst [vmem:[#allocation13 + $0x20] sm:$0xff] %v3250
    %3274 = vst [vmem:[#allocation13 + $0x28] sm:$0xff] %v3252
    %3275 = vst [vmem:[#allocation13 + $0x30] sm:$0xff] %v3254
    %3276 = vst [vmem:[#allocation13 + $0x38] sm:$0xff] %v3256
    %3277 = vst [vmem:[#allocation13 + $0x40] sm:$0xff] %v3258
    %3278 = vst [vmem:[#allocation13 + $0x48] sm:$0xff] %v3260
    %3279 = vst [vmem:[#allocation13 + $0x50] sm:$0xff] %v3262
    %3280 = vst [vmem:[#allocation13 + $0x58] sm:$0xff] %v3264
    %3281 = vst [vmem:[#allocation13 + $0x60] sm:$0xff] %v3266
    %3282 = vst [vmem:[#allocation13 + $0x68] sm:$0xff] %v3268
    // Predicated region
    $region54: #{tpu_custom_call.1} parent=1 // pred_check
      _
    $region55: #{tpu_custom_call.1} parent=1 // pred_check_branch
      %3284 = sbr.rel (0) target = $region57
    $region56: #{tpu_custom_call.1} parent=1 // pred_region
      %s3286 = ssub.s32 1792, 1792
      %3287 = vsyncadd [#allocation4], %s3286
      %s3288 = sshll.u32 [#allocation13], 4
      %s3289 = int_to_ptr.vmem [resolvable:$true] %s3288
      %3294 = dma.vmem_to_hbm [thread:$0]  %s3289, 1792, %s7, [#allocation4], 896, 896, 56
    $region57: #{tpu_custom_call.1} parent=1 // pred_fallthru
      _
    // Predicated region
    $region58: #{tpu_custom_call.1} parent=1 // pred_check
      _
    $region59: #{tpu_custom_call.1} parent=1 // pred_check_branch
      %3296 = sbr.rel (0) target = $region61
    $region60: #{tpu_custom_call.1} parent=1 // pred_region
      %3297 = dma.done [#allocation4], 1792
    $region61: #{tpu_custom_call.1} parent=1 // pred_fallthru
      _
    %3298 = vsyncpa [#allocation3], 1
    %3299 = vsyncpa [#allocation6], 1
    %3300 = vsyncpa [#allocation9], 1
    %3301 = vsyncpa [#allocation12], 1
    %3302 = vsyncpa [#allocation4], 1

</llo_original>
